<compile_context>
chip_gen: v7x
topology: tpu7x:2x2x1
jax: 0.10.0
libtpu: 0.0.40
codegen_flags: <defaults>
</compile_context>

<pallas_src>
import functools
import math

import jax
import jax.numpy as jnp
from jax import lax
from jax.experimental import pallas as pl
from jax.experimental.pallas import tpu as pltpu


# --------------------------- fused attention ------------------------------

def _fused_attn_kernel(q_ref, k_ref, v_ref, m_ref, wq_ref, wc_ref, g_ref, b_ref,
                       o_ref, cov_ref, *, nheads, scale):
    """One batch element per grid step; all heads processed in this step."""
    q = q_ref[0]                       # (lq, d)  -- also the residual input
    k = k_ref[0]                       # (lk, d)  -- unprojected (reference quirk)
    v = v_ref[0]                       # (lk, d)  -- unprojected (reference quirk)
    masked = m_ref[0] != 0             # (lq, lk) bool, True => masked

    lq, d = q.shape
    dh = d // nheads
    neg = jnp.float32(-1e30)

    # Q projection (fc_query, no bias).
    pq = jnp.dot(q, wq_ref[...], preferred_element_type=jnp.float32)  # (lq, d)

    cov_acc = jnp.zeros(masked.shape, jnp.float32)
    attn_out = jnp.zeros((lq, d), jnp.float32)

    # Static unroll over heads: tiny matmuls issued back-to-back on the MXU,
    # everything stays in VMEM/vregs (no transposes, no HBM traffic).
    for hi in range(nheads):
        lo, hi_end = hi * dh, (hi + 1) * dh
        q_h = pq[:, lo:hi_end]                       # (lq, dh)
        k_h = k[:, lo:hi_end]                        # (lk, dh)
        v_h = v[:, lo:hi_end]                        # (lk, dh)

        # QK^T without materializing a transpose: contract last dims.
        s = lax.dot_general(q_h, k_h, (((1,), (1,)), ((), ())),
                            preferred_element_type=jnp.float32) * scale  # (lq, lk)
        s = jnp.where(masked, neg, s)

        s_max = jnp.max(s, axis=-1, keepdims=True)
        e = jnp.exp(s - s_max)
        denom = jnp.sum(e, axis=-1, keepdims=True)
        p = e * pl.reciprocal(denom, approx=True)    # softmax probabilities

        cov_acc = cov_acc + p

        o_h = jnp.dot(p, v_h, preferred_element_type=jnp.float32)       # (lq, dh)
        # Fold fc_concat per head: out += o_h @ wc[lo:hi_end, :]
        attn_out = attn_out + jnp.dot(o_h, wc_ref[lo:hi_end, :],
                                      preferred_element_type=jnp.float32)

    cov_ref[0] = (cov_acc * (1.0 / nheads)).astype(cov_ref.dtype)

    # Residual + LayerNorm (unbiased std, eps added to std).
    y = attn_out + q
    mean = jnp.mean(y, axis=-1, keepdims=True)
    diff = y - mean
    var = jnp.sum(diff * diff, axis=-1, keepdims=True) * (1.0 / (d - 1))
    std = jnp.sqrt(var)
    o_ref[0] = (g_ref[...] * diff / (std + 1e-6) + b_ref[...]).astype(o_ref.dtype)


def multihead_attention(params, query, key, value, mask, h):
    b, lq, d = query.shape
    lk = key.shape[1]
    scale = 1.0 / math.sqrt(d // h)

    out, coverage = pl.pallas_call(
        functools.partial(_fused_attn_kernel, nheads=h, scale=scale),
        out_shape=(
            jax.ShapeDtypeStruct((b, lq, d), query.dtype),
            jax.ShapeDtypeStruct((b, lq, lk), jnp.float32),
        ),
        grid=(b,),
        in_specs=[
            pl.BlockSpec((1, lq, d), lambda i: (i, 0, 0)),
            pl.BlockSpec((1, lk, d), lambda i: (i, 0, 0)),
            pl.BlockSpec((1, lk, d), lambda i: (i, 0, 0)),
            pl.BlockSpec((1, lq, lk), lambda i: (i, 0, 0)),
            pl.BlockSpec((d, d), lambda i: (0, 0)),      # wq, resident
            pl.BlockSpec((d, d), lambda i: (0, 0)),      # wc, resident
            pl.BlockSpec((1, d), lambda i: (0, 0)),      # ln gamma
            pl.BlockSpec((1, d), lambda i: (0, 0)),      # ln beta
        ],
        out_specs=(
            pl.BlockSpec((1, lq, d), lambda i: (i, 0, 0)),
            pl.BlockSpec((1, lq, lk), lambda i: (i, 0, 0)),
        ),
        compiler_params=pltpu.CompilerParams(dimension_semantics=("parallel",)),
    )(query, key, value, mask.astype(jnp.int8),
      params["wq"], params["wc"],
      params["ln_g"].reshape(1, d), params["ln_b"].reshape(1, d))
    return out, coverage


# ------------------------------ fused FFN ---------------------------------

def _ffn_kernel(x_ref, w1_ref, b1_ref, w2_ref, b2_ref, g_ref, b_ref, o_ref):
    x = x_ref[...]                                                     # (tm, d)
    hid = jnp.dot(x, w1_ref[...], preferred_element_type=jnp.float32) + b1_ref[...]
    hid = jnp.maximum(hid, 0.0)
    y = jnp.dot(hid, w2_ref[...], preferred_element_type=jnp.float32) + b2_ref[...]
    y = y + x                                                          # residual

    d = y.shape[-1]
    mean = jnp.mean(y, axis=-1, keepdims=True)
    diff = y - mean
    var = jnp.sum(diff * diff, axis=-1, keepdims=True) * (1.0 / (d - 1))
    std = jnp.sqrt(var)
    o_ref[...] = (g_ref[...] * diff / (std + 1e-6) + b_ref[...]).astype(o_ref.dtype)


def _pick_row_tile(m):
    # Largest tile that divides M while keeping >=2 grid blocks (megacore).
    for t in (512, 256, 128, 64, 32, 16, 8):
        if m % t == 0 and m // t >= 2:
            return t
    return m


def feedforward(params, x):
    b, l, d = x.shape
    m = b * l
    tm = _pick_row_tile(m)
    dff = params["w1"].shape[1]
    x2 = x.reshape(m, d)

    out = pl.pallas_call(
        _ffn_kernel,
        out_shape=jax.ShapeDtypeStruct((m, d), x.dtype),
        grid=(m // tm,),
        in_specs=[
            pl.BlockSpec((tm, d), lambda i: (i, 0)),
            pl.BlockSpec((d, dff), lambda i: (0, 0)),    # w1, resident
            pl.BlockSpec((1, dff), lambda i: (0, 0)),    # b1
            pl.BlockSpec((dff, d), lambda i: (0, 0)),    # w2, resident
            pl.BlockSpec((1, d), lambda i: (0, 0)),      # b2
            pl.BlockSpec((1, d), lambda i: (0, 0)),      # ln gamma
            pl.BlockSpec((1, d), lambda i: (0, 0)),      # ln beta
        ],
        out_specs=pl.BlockSpec((tm, d), lambda i: (i, 0)),
        compiler_params=pltpu.CompilerParams(dimension_semantics=("parallel",)),
    )(x2, params["w1"], params["b1"].reshape(1, dff),
      params["w2"], params["b2"].reshape(1, d),
      params["ln_g"].reshape(1, d), params["ln_b"].reshape(1, d))
    return out.reshape(b, l, d)


# ----------------------------- decoder layer ------------------------------

def decoder_layer(params, query, key, value, context, mask_tgt, mask_src, h):
    out, _ = multihead_attention(params["tgt"], query, key, value, mask_tgt, h)
    out, coverage = multihead_attention(params["src"], out, context, context,
                                        mask_src, h)
    out = feedforward(params["ff"], out)
    return out, coverage


def init_params(rng, d_model, d_ff):
    ks = jax.random.split(rng, 8)

    def lin(k, i, o):
        return 0.1 * jax.random.normal(k, (i, o), jnp.float32)

    def mha_params(k1, k2):
        return dict(
            wq=lin(k1, d_model, d_model),
            wc=lin(k2, d_model, d_model),
            ln_g=jnp.ones((d_model,), jnp.float32),
            ln_b=jnp.zeros((d_model,), jnp.float32),
        )

    return dict(
        tgt=mha_params(ks[0], ks[1]),
        src=mha_params(ks[2], ks[3]),
        ff=dict(
            w1=lin(ks[4], d_model, d_ff),
            b1=0.1 * jax.random.normal(ks[5], (d_ff,), jnp.float32),
            w2=lin(ks[6], d_ff, d_model),
            b2=0.1 * jax.random.normal(ks[7], (d_model,), jnp.float32),
            ln_g=jnp.ones((d_model,), jnp.float32),
            ln_b=jnp.zeros((d_model,), jnp.float32),
        ),
    )


if __name__ == "__main__":
    b, h, d_model, d_ff = 2, 4, 32, 64
    len_q = len_k = 8
    len_src = 16

    root = jax.random.PRNGKey(0)
    kq, kk, kv, kc, kp = jax.random.split(root, 5)
    query = jax.random.normal(kq, (b, len_q, d_model), jnp.float32)
    key_t = jax.random.normal(kk, (b, len_k, d_model), jnp.float32)
    value = jax.random.normal(kv, (b, len_k, d_model), jnp.float32)
    context = jax.random.normal(kc, (b, len_src, d_model), jnp.float32)

    # masks: True => masked (score forced to -1e30 ~= -inf before softmax)
    causal = jnp.triu(jnp.ones((len_q, len_k), dtype=bool), k=1)
    mask_tgt = jnp.broadcast_to(causal[None], (b, len_q, len_k))
    mask_src = jnp.zeros((b, len_q, len_src), dtype=bool)
    mask_src = mask_src.at[1, :, len_src - 4:].set(True)  # pad last 4 src pos of batch 1

    params = init_params(kp, d_model, d_ff)

    out, coverage = decoder_layer(params, query, key_t, value, context,
                                  mask_tgt, mask_src, h)
    jax.block_until_ready((out, coverage))
    assert out.shape == (b, len_q, d_model)
    assert coverage.shape == (b, len_q, len_src)
    assert bool(jnp.all(jnp.isfinite(out))) and bool(jnp.all(jnp.isfinite(coverage)))
    print("KERNEL_OK")
</pallas_src>

<mosaic_0001>
module attributes {stable_mosaic.version = 11 : i64} {
  func.func @_fused_attn_kernel(%arg0: i32, %arg1: memref<1x8x32xf32, #tpu.memory_space<vmem>>, %arg2: memref<1x8x32xf32, #tpu.memory_space<vmem>>, %arg3: memref<1x8x32xf32, #tpu.memory_space<vmem>>, %arg4: memref<1x8x8xi8, #tpu.memory_space<vmem>>, %arg5: memref<32x32xf32, #tpu.memory_space<vmem>>, %arg6: memref<32x32xf32, #tpu.memory_space<vmem>>, %arg7: memref<1x32xf32, #tpu.memory_space<vmem>>, %arg8: memref<1x32xf32, #tpu.memory_space<vmem>>, %arg9: memref<1x8x32xf32, #tpu.memory_space<vmem>>, %arg10: memref<1x8x8xf32, #tpu.memory_space<vmem>>) attributes {dimension_semantics = [#tpu.dimension_semantics<parallel>], iteration_bounds = array<i64: 2>, scalar_prefetch = 0 : i64, scratch_operands = 0 : i64, tpu.core_type = #tpu.core_type<tc>, window_params = [{transform_indices = @transform_0, window_bounds = array<i64: 1, 8, 32>}, {transform_indices = @transform_1, window_bounds = array<i64: 1, 8, 32>}, {transform_indices = @transform_2, window_bounds = array<i64: 1, 8, 32>}, {transform_indices = @transform_3, window_bounds = array<i64: 1, 8, 8>}, {pipeline_mode = #tpu.pipeline_mode<synchronous>, transform_indices = @transform_4, window_bounds = array<i64: 32, 32>}, {pipeline_mode = #tpu.pipeline_mode<synchronous>, transform_indices = @transform_5, window_bounds = array<i64: 32, 32>}, {pipeline_mode = #tpu.pipeline_mode<synchronous>, transform_indices = @transform_6, window_bounds = array<i64: 1, 32>}, {pipeline_mode = #tpu.pipeline_mode<synchronous>, transform_indices = @transform_7, window_bounds = array<i64: 1, 32>}, {transform_indices = @transform_8, window_bounds = array<i64: 1, 8, 32>}, {transform_indices = @transform_9, window_bounds = array<i64: 1, 8, 8>}]} {
    %c0 = arith.constant 0 : index
    %c0_0 = arith.constant 0 : index
    %c0_1 = arith.constant 0 : index
    %0 = vector.load %arg1[%c0, %c0_0, %c0_1] : memref<1x8x32xf32, #tpu.memory_space<vmem>>, vector<1x8x32xf32>
    %1 = vector.shape_cast %0 : vector<1x8x32xf32> to vector<8x32xf32>
    %c0_2 = arith.constant 0 : index
    %c0_3 = arith.constant 0 : index
    %c0_4 = arith.constant 0 : index
    %2 = vector.load %arg2[%c0_2, %c0_3, %c0_4] : memref<1x8x32xf32, #tpu.memory_space<vmem>>, vector<1x8x32xf32>
    %3 = vector.shape_cast %2 : vector<1x8x32xf32> to vector<8x32xf32>
    %c0_5 = arith.constant 0 : index
    %c0_6 = arith.constant 0 : index
    %c0_7 = arith.constant 0 : index
    %4 = vector.load %arg3[%c0_5, %c0_6, %c0_7] : memref<1x8x32xf32, #tpu.memory_space<vmem>>, vector<1x8x32xf32>
    %5 = vector.shape_cast %4 : vector<1x8x32xf32> to vector<8x32xf32>
    %c0_8 = arith.constant 0 : index
    %c0_9 = arith.constant 0 : index
    %c0_10 = arith.constant 0 : index
    %6 = vector.load %arg4[%c0_8, %c0_9, %c0_10] : memref<1x8x8xi8, #tpu.memory_space<vmem>>, vector<1x8x8xi8>
    %7 = vector.shape_cast %6 : vector<1x8x8xi8> to vector<8x8xi8>
    %c0_i8 = arith.constant 0 : i8
    %8 = vector.broadcast %c0_i8 : i8 to vector<8x8xi8>
    %9 = arith.cmpi ne, %7, %8 : vector<8x8xi8>
    %c0_11 = arith.constant 0 : index
    %c0_12 = arith.constant 0 : index
    %10 = vector.load %arg5[%c0_11, %c0_12] : memref<32x32xf32, #tpu.memory_space<vmem>>, vector<32x32xf32>
    %cst = arith.constant dense<0.000000e+00> : vector<8x32xf32>
    %11 = tpu.matmul %1, %10, %cst {dimension_numbers = #tpu.dot_dimension_numbers<[1], [0], [0], [1], [0, 0, 1, 1], [], []>} : vector<8x32xf32>, vector<32x32xf32>, vector<8x32xf32> -> vector<8x32xf32>
    %cst_13 = arith.constant 0.000000e+00 : f32
    %12 = vector.broadcast %cst_13 : f32 to vector<8x8xf32>
    %cst_14 = arith.constant 0.000000e+00 : f32
    %13 = vector.broadcast %cst_14 : f32 to vector<8x32xf32>
    %14 = vector.extract_strided_slice %11 {offsets = [0, 0], sizes = [8, 8], strides = [1, 1]} : vector<8x32xf32> to vector<8x8xf32>
    %15 = vector.extract_strided_slice %3 {offsets = [0, 0], sizes = [8, 8], strides = [1, 1]} : vector<8x32xf32> to vector<8x8xf32>
    %16 = vector.extract_strided_slice %5 {offsets = [0, 0], sizes = [8, 8], strides = [1, 1]} : vector<8x32xf32> to vector<8x8xf32>
    %cst_15 = arith.constant dense<0.000000e+00> : vector<8x8xf32>
    %17 = tpu.matmul %14, %15, %cst_15 {dimension_numbers = #tpu.dot_dimension_numbers<[1], [1], [0], [0], [0, 0, 1, 0], [], []>} : vector<8x8xf32>, vector<8x8xf32>, vector<8x8xf32> -> vector<8x8xf32>
    %cst_16 = arith.constant 0.353553385 : f32
    %18 = vector.broadcast %cst_16 : f32 to vector<8x8xf32>
    %19 = arith.mulf %17, %18 : vector<8x8xf32>
    %cst_17 = arith.constant -1.000000e+30 : f32
    %20 = vector.broadcast %cst_17 : f32 to vector<8x8xf32>
    %21 = arith.select %9, %20, %19 : vector<8x8xi1>, vector<8x8xf32>
    %cst_18 = arith.constant dense<0xFF800000> : vector<8xf32>
    %22 = vector.multi_reduction <maximumf>, %21, %cst_18 [1] : vector<8x8xf32> to vector<8xf32>
    %23 = vector.shape_cast %22 : vector<8xf32> to vector<8x1xf32>
    %24 = vector.broadcast %23 : vector<8x1xf32> to vector<8x8xf32>
    %25 = arith.subf %21, %24 : vector<8x8xf32>
    %26 = math.exp %25 : vector<8x8xf32>
    %cst_19 = arith.constant dense<0.000000e+00> : vector<8xf32>
    %27 = vector.multi_reduction <add>, %26, %cst_19 [1] : vector<8x8xf32> to vector<8xf32>
    %28 = vector.shape_cast %27 : vector<8xf32> to vector<8x1xf32>
    %29 = tpu.reciprocal %28 {approx = true} : vector<8x1xf32> -> vector<8x1xf32>
    %30 = vector.broadcast %29 : vector<8x1xf32> to vector<8x8xf32>
    %31 = arith.mulf %26, %30 : vector<8x8xf32>
    %32 = arith.addf %12, %31 : vector<8x8xf32>
    %cst_20 = arith.constant dense<0.000000e+00> : vector<8x8xf32>
    %33 = tpu.matmul %31, %16, %cst_20 {dimension_numbers = #tpu.dot_dimension_numbers<[1], [0], [0], [1], [0, 0, 1, 1], [], []>} : vector<8x8xf32>, vector<8x8xf32>, vector<8x8xf32> -> vector<8x8xf32>
    %c0_21 = arith.constant 0 : index
    %c0_22 = arith.constant 0 : index
    %34 = vector.load %arg6[%c0_21, %c0_22] : memref<32x32xf32, #tpu.memory_space<vmem>>, vector<8x32xf32>
    %cst_23 = arith.constant dense<0.000000e+00> : vector<8x32xf32>
    %35 = tpu.matmul %33, %34, %cst_23 {dimension_numbers = #tpu.dot_dimension_numbers<[1], [0], [0], [1], [0, 0, 1, 1], [], []>} : vector<8x8xf32>, vector<8x32xf32>, vector<8x32xf32> -> vector<8x32xf32>
    %36 = arith.addf %13, %35 : vector<8x32xf32>
    %37 = vector.extract_strided_slice %11 {offsets = [0, 8], sizes = [8, 8], strides = [1, 1]} : vector<8x32xf32> to vector<8x8xf32>
    %38 = vector.extract_strided_slice %3 {offsets = [0, 8], sizes = [8, 8], strides = [1, 1]} : vector<8x32xf32> to vector<8x8xf32>
    %39 = vector.extract_strided_slice %5 {offsets = [0, 8], sizes = [8, 8], strides = [1, 1]} : vector<8x32xf32> to vector<8x8xf32>
    %cst_24 = arith.constant dense<0.000000e+00> : vector<8x8xf32>
    %40 = tpu.matmul %37, %38, %cst_24 {dimension_numbers = #tpu.dot_dimension_numbers<[1], [1], [0], [0], [0, 0, 1, 0], [], []>} : vector<8x8xf32>, vector<8x8xf32>, vector<8x8xf32> -> vector<8x8xf32>
    %cst_25 = arith.constant 0.353553385 : f32
    %41 = vector.broadcast %cst_25 : f32 to vector<8x8xf32>
    %42 = arith.mulf %40, %41 : vector<8x8xf32>
    %cst_26 = arith.constant -1.000000e+30 : f32
    %43 = vector.broadcast %cst_26 : f32 to vector<8x8xf32>
    %44 = arith.select %9, %43, %42 : vector<8x8xi1>, vector<8x8xf32>
    %cst_27 = arith.constant dense<0xFF800000> : vector<8xf32>
    %45 = vector.multi_reduction <maximumf>, %44, %cst_27 [1] : vector<8x8xf32> to vector<8xf32>
    %46 = vector.shape_cast %45 : vector<8xf32> to vector<8x1xf32>
    %47 = vector.broadcast %46 : vector<8x1xf32> to vector<8x8xf32>
    %48 = arith.subf %44, %47 : vector<8x8xf32>
    %49 = math.exp %48 : vector<8x8xf32>
    %cst_28 = arith.constant dense<0.000000e+00> : vector<8xf32>
    %50 = vector.multi_reduction <add>, %49, %cst_28 [1] : vector<8x8xf32> to vector<8xf32>
    %51 = vector.shape_cast %50 : vector<8xf32> to vector<8x1xf32>
    %52 = tpu.reciprocal %51 {approx = true} : vector<8x1xf32> -> vector<8x1xf32>
    %53 = vector.broadcast %52 : vector<8x1xf32> to vector<8x8xf32>
    %54 = arith.mulf %49, %53 : vector<8x8xf32>
    %55 = arith.addf %32, %54 : vector<8x8xf32>
    %cst_29 = arith.constant dense<0.000000e+00> : vector<8x8xf32>
    %56 = tpu.matmul %54, %39, %cst_29 {dimension_numbers = #tpu.dot_dimension_numbers<[1], [0], [0], [1], [0, 0, 1, 1], [], []>} : vector<8x8xf32>, vector<8x8xf32>, vector<8x8xf32> -> vector<8x8xf32>
    %c8 = arith.constant 8 : index
    %c0_30 = arith.constant 0 : index
    %57 = vector.load %arg6[%c8, %c0_30] : memref<32x32xf32, #tpu.memory_space<vmem>>, vector<8x32xf32>
    %cst_31 = arith.constant dense<0.000000e+00> : vector<8x32xf32>
    %58 = tpu.matmul %56, %57, %cst_31 {dimension_numbers = #tpu.dot_dimension_numbers<[1], [0], [0], [1], [0, 0, 1, 1], [], []>} : vector<8x8xf32>, vector<8x32xf32>, vector<8x32xf32> -> vector<8x32xf32>
    %59 = arith.addf %36, %58 : vector<8x32xf32>
    %60 = vector.extract_strided_slice %11 {offsets = [0, 16], sizes = [8, 8], strides = [1, 1]} : vector<8x32xf32> to vector<8x8xf32>
    %61 = vector.extract_strided_slice %3 {offsets = [0, 16], sizes = [8, 8], strides = [1, 1]} : vector<8x32xf32> to vector<8x8xf32>
    %62 = vector.extract_strided_slice %5 {offsets = [0, 16], sizes = [8, 8], strides = [1, 1]} : vector<8x32xf32> to vector<8x8xf32>
    %cst_32 = arith.constant dense<0.000000e+00> : vector<8x8xf32>
    %63 = tpu.matmul %60, %61, %cst_32 {dimension_numbers = #tpu.dot_dimension_numbers<[1], [1], [0], [0], [0, 0, 1, 0], [], []>} : vector<8x8xf32>, vector<8x8xf32>, vector<8x8xf32> -> vector<8x8xf32>
    %cst_33 = arith.constant 0.353553385 : f32
    %64 = vector.broadcast %cst_33 : f32 to vector<8x8xf32>
    %65 = arith.mulf %63, %64 : vector<8x8xf32>
    %cst_34 = arith.constant -1.000000e+30 : f32
    %66 = vector.broadcast %cst_34 : f32 to vector<8x8xf32>
    %67 = arith.select %9, %66, %65 : vector<8x8xi1>, vector<8x8xf32>
    %cst_35 = arith.constant dense<0xFF800000> : vector<8xf32>
    %68 = vector.multi_reduction <maximumf>, %67, %cst_35 [1] : vector<8x8xf32> to vector<8xf32>
    %69 = vector.shape_cast %68 : vector<8xf32> to vector<8x1xf32>
    %70 = vector.broadcast %69 : vector<8x1xf32> to vector<8x8xf32>
    %71 = arith.subf %67, %70 : vector<8x8xf32>
    %72 = math.exp %71 : vector<8x8xf32>
    %cst_36 = arith.constant dense<0.000000e+00> : vector<8xf32>
    %73 = vector.multi_reduction <add>, %72, %cst_36 [1] : vector<8x8xf32> to vector<8xf32>
    %74 = vector.shape_cast %73 : vector<8xf32> to vector<8x1xf32>
    %75 = tpu.reciprocal %74 {approx = true} : vector<8x1xf32> -> vector<8x1xf32>
    %76 = vector.broadcast %75 : vector<8x1xf32> to vector<8x8xf32>
    %77 = arith.mulf %72, %76 : vector<8x8xf32>
    %78 = arith.addf %55, %77 : vector<8x8xf32>
    %cst_37 = arith.constant dense<0.000000e+00> : vector<8x8xf32>
    %79 = tpu.matmul %77, %62, %cst_37 {dimension_numbers = #tpu.dot_dimension_numbers<[1], [0], [0], [1], [0, 0, 1, 1], [], []>} : vector<8x8xf32>, vector<8x8xf32>, vector<8x8xf32> -> vector<8x8xf32>
    %c16 = arith.constant 16 : index
    %c0_38 = arith.constant 0 : index
    %80 = vector.load %arg6[%c16, %c0_38] : memref<32x32xf32, #tpu.memory_space<vmem>>, vector<8x32xf32>
    %cst_39 = arith.constant dense<0.000000e+00> : vector<8x32xf32>
    %81 = tpu.matmul %79, %80, %cst_39 {dimension_numbers = #tpu.dot_dimension_numbers<[1], [0], [0], [1], [0, 0, 1, 1], [], []>} : vector<8x8xf32>, vector<8x32xf32>, vector<8x32xf32> -> vector<8x32xf32>
    %82 = arith.addf %59, %81 : vector<8x32xf32>
    %83 = vector.extract_strided_slice %11 {offsets = [0, 24], sizes = [8, 8], strides = [1, 1]} : vector<8x32xf32> to vector<8x8xf32>
    %84 = vector.extract_strided_slice %3 {offsets = [0, 24], sizes = [8, 8], strides = [1, 1]} : vector<8x32xf32> to vector<8x8xf32>
    %85 = vector.extract_strided_slice %5 {offsets = [0, 24], sizes = [8, 8], strides = [1, 1]} : vector<8x32xf32> to vector<8x8xf32>
    %cst_40 = arith.constant dense<0.000000e+00> : vector<8x8xf32>
    %86 = tpu.matmul %83, %84, %cst_40 {dimension_numbers = #tpu.dot_dimension_numbers<[1], [1], [0], [0], [0, 0, 1, 0], [], []>} : vector<8x8xf32>, vector<8x8xf32>, vector<8x8xf32> -> vector<8x8xf32>
    %cst_41 = arith.constant 0.353553385 : f32
    %87 = vector.broadcast %cst_41 : f32 to vector<8x8xf32>
    %88 = arith.mulf %86, %87 : vector<8x8xf32>
    %cst_42 = arith.constant -1.000000e+30 : f32
    %89 = vector.broadcast %cst_42 : f32 to vector<8x8xf32>
    %90 = arith.select %9, %89, %88 : vector<8x8xi1>, vector<8x8xf32>
    %cst_43 = arith.constant dense<0xFF800000> : vector<8xf32>
    %91 = vector.multi_reduction <maximumf>, %90, %cst_43 [1] : vector<8x8xf32> to vector<8xf32>
    %92 = vector.shape_cast %91 : vector<8xf32> to vector<8x1xf32>
    %93 = vector.broadcast %92 : vector<8x1xf32> to vector<8x8xf32>
    %94 = arith.subf %90, %93 : vector<8x8xf32>
    %95 = math.exp %94 : vector<8x8xf32>
    %cst_44 = arith.constant dense<0.000000e+00> : vector<8xf32>
    %96 = vector.multi_reduction <add>, %95, %cst_44 [1] : vector<8x8xf32> to vector<8xf32>
    %97 = vector.shape_cast %96 : vector<8xf32> to vector<8x1xf32>
    %98 = tpu.reciprocal %97 {approx = true} : vector<8x1xf32> -> vector<8x1xf32>
    %99 = vector.broadcast %98 : vector<8x1xf32> to vector<8x8xf32>
    %100 = arith.mulf %95, %99 : vector<8x8xf32>
    %101 = arith.addf %78, %100 : vector<8x8xf32>
    %cst_45 = arith.constant dense<0.000000e+00> : vector<8x8xf32>
    %102 = tpu.matmul %100, %85, %cst_45 {dimension_numbers = #tpu.dot_dimension_numbers<[1], [0], [0], [1], [0, 0, 1, 1], [], []>} : vector<8x8xf32>, vector<8x8xf32>, vector<8x8xf32> -> vector<8x8xf32>
    %c24 = arith.constant 24 : index
    %c0_46 = arith.constant 0 : index
    %103 = vector.load %arg6[%c24, %c0_46] : memref<32x32xf32, #tpu.memory_space<vmem>>, vector<8x32xf32>
    %cst_47 = arith.constant dense<0.000000e+00> : vector<8x32xf32>
    %104 = tpu.matmul %102, %103, %cst_47 {dimension_numbers = #tpu.dot_dimension_numbers<[1], [0], [0], [1], [0, 0, 1, 1], [], []>} : vector<8x8xf32>, vector<8x32xf32>, vector<8x32xf32> -> vector<8x32xf32>
    %105 = arith.addf %82, %104 : vector<8x32xf32>
    %cst_48 = arith.constant 2.500000e-01 : f32
    %106 = vector.broadcast %cst_48 : f32 to vector<8x8xf32>
    %107 = arith.mulf %101, %106 : vector<8x8xf32>
    %c0_49 = arith.constant 0 : index
    %c0_50 = arith.constant 0 : index
    %c0_51 = arith.constant 0 : index
    %108 = vector.load %arg10[%c0_49, %c0_50, %c0_51] : memref<1x8x8xf32, #tpu.memory_space<vmem>>, vector<1x8x8xf32>
    %109 = vector.shape_cast %108 : vector<1x8x8xf32> to vector<8x8xf32>
    %110 = vector.shape_cast %107 : vector<8x8xf32> to vector<1x8x8xf32>
    tpu.vector_store %arg10[%c0_49, %c0_50, %c0_51], %110 {strides = array<i32>} : memref<1x8x8xf32, #tpu.memory_space<vmem>>, vector<1x8x8xf32>,
    %111 = arith.addf %105, %1 : vector<8x32xf32>
    %cst_52 = arith.constant dense<0.000000e+00> : vector<8xf32>
    %112 = vector.multi_reduction <add>, %111, %cst_52 [1] : vector<8x32xf32> to vector<8xf32>
    %113 = vector.shape_cast %112 : vector<8xf32> to vector<8x1xf32>
    %cst_53 = arith.constant 3.200000e+01 : f32
    %114 = vector.broadcast %cst_53 : f32 to vector<8x1xf32>
    %115 = arith.divf %113, %114 : vector<8x1xf32>
    %116 = vector.broadcast %115 : vector<8x1xf32> to vector<8x32xf32>
    %117 = arith.subf %111, %116 : vector<8x32xf32>
    %118 = arith.mulf %117, %117 : vector<8x32xf32>
    %cst_54 = arith.constant dense<0.000000e+00> : vector<8xf32>
    %119 = vector.multi_reduction <add>, %118, %cst_54 [1] : vector<8x32xf32> to vector<8xf32>
    %120 = vector.shape_cast %119 : vector<8xf32> to vector<8x1xf32>
    %cst_55 = arith.constant 0.0322580636 : f32
    %121 = vector.broadcast %cst_55 : f32 to vector<8x1xf32>
    %122 = arith.mulf %120, %121 : vector<8x1xf32>
    %123 = math.sqrt %122 : vector<8x1xf32>
    %c0_56 = arith.constant 0 : index
    %c0_57 = arith.constant 0 : index
    %124 = vector.load %arg7[%c0_56, %c0_57] : memref<1x32xf32, #tpu.memory_space<vmem>>, vector<1x32xf32>
    %125 = vector.broadcast %124 : vector<1x32xf32> to vector<8x32xf32>
    %126 = arith.mulf %125, %117 : vector<8x32xf32>
    %cst_58 = arith.constant 9.99999997E-7 : f32
    %127 = vector.broadcast %cst_58 : f32 to vector<8x1xf32>
    %128 = arith.addf %123, %127 : vector<8x1xf32>
    %129 = vector.broadcast %128 : vector<8x1xf32> to vector<8x32xf32>
    %130 = arith.divf %126, %129 : vector<8x32xf32>
    %c0_59 = arith.constant 0 : index
    %c0_60 = arith.constant 0 : index
    %131 = vector.load %arg8[%c0_59, %c0_60] : memref<1x32xf32, #tpu.memory_space<vmem>>, vector<1x32xf32>
    %132 = vector.broadcast %131 : vector<1x32xf32> to vector<8x32xf32>
    %133 = arith.addf %130, %132 : vector<8x32xf32>
    %c0_61 = arith.constant 0 : index
    %c0_62 = arith.constant 0 : index
    %c0_63 = arith.constant 0 : index
    %134 = vector.load %arg9[%c0_61, %c0_62, %c0_63] : memref<1x8x32xf32, #tpu.memory_space<vmem>>, vector<1x8x32xf32>
    %135 = vector.shape_cast %134 : vector<1x8x32xf32> to vector<8x32xf32>
    %136 = vector.shape_cast %133 : vector<8x32xf32> to vector<1x8x32xf32>
    tpu.vector_store %arg9[%c0_61, %c0_62, %c0_63], %136 {strides = array<i32>} : memref<1x8x32xf32, #tpu.memory_space<vmem>>, vector<1x8x32xf32>,
    return
  }
  func.func @transform_0(%arg0: i32) -> (i32, i32, i32) {
    %c0_i32 = arith.constant 0 : i32
    %c0_i32_0 = arith.constant 0 : i32
    %c0_i32_1 = arith.constant 0 : i32
    return %arg0, %c0_i32, %c0_i32_0 : i32, i32, i32
  }
  func.func @transform_1(%arg0: i32) -> (i32, i32, i32) {
    %c0_i32 = arith.constant 0 : i32
    %c0_i32_0 = arith.constant 0 : i32
    %c0_i32_1 = arith.constant 0 : i32
    return %arg0, %c0_i32, %c0_i32_0 : i32, i32, i32
  }
  func.func @transform_2(%arg0: i32) -> (i32, i32, i32) {
    %c0_i32 = arith.constant 0 : i32
    %c0_i32_0 = arith.constant 0 : i32
    %c0_i32_1 = arith.constant 0 : i32
    return %arg0, %c0_i32, %c0_i32_0 : i32, i32, i32
  }
  func.func @transform_3(%arg0: i32) -> (i32, i32, i32) {
    %c0_i32 = arith.constant 0 : i32
    %c0_i32_0 = arith.constant 0 : i32
    %c0_i32_1 = arith.constant 0 : i32
    return %arg0, %c0_i32, %c0_i32_0 : i32, i32, i32
  }
  func.func @transform_4(%arg0: i32) -> (i32, i32) {
    %c0_i32 = arith.constant 0 : i32
    %c0_i32_0 = arith.constant 0 : i32
    %c0_i32_1 = arith.constant 0 : i32
    return %c0_i32, %c0_i32_0 : i32, i32
  }
  func.func @transform_5(%arg0: i32) -> (i32, i32) {
    %c0_i32 = arith.constant 0 : i32
    %c0_i32_0 = arith.constant 0 : i32
    %c0_i32_1 = arith.constant 0 : i32
    return %c0_i32, %c0_i32_0 : i32, i32
  }
  func.func @transform_6(%arg0: i32) -> (i32, i32) {
    %c0_i32 = arith.constant 0 : i32
    %c0_i32_0 = arith.constant 0 : i32
    %c0_i32_1 = arith.constant 0 : i32
    return %c0_i32, %c0_i32_0 : i32, i32
  }
  func.func @transform_7(%arg0: i32) -> (i32, i32) {
    %c0_i32 = arith.constant 0 : i32
    %c0_i32_0 = arith.constant 0 : i32
    %c0_i32_1 = arith.constant 0 : i32
    return %c0_i32, %c0_i32_0 : i32, i32
  }
  func.func @transform_8(%arg0: i32) -> (i32, i32, i32) {
    %c0_i32 = arith.constant 0 : i32
    %c0_i32_0 = arith.constant 0 : i32
    %c0_i32_1 = arith.constant 0 : i32
    return %arg0, %c0_i32, %c0_i32_0 : i32, i32, i32
  }
  func.func @transform_9(%arg0: i32) -> (i32, i32, i32) {
    %c0_i32 = arith.constant 0 : i32
    %c0_i32_0 = arith.constant 0 : i32
    %c0_i32_1 = arith.constant 0 : i32
    return %arg0, %c0_i32, %c0_i32_0 : i32, i32, i32
  }
}

</mosaic_0001>

<llo_original>
// kernel: tpu_custom_call.1
$region0: #{tpu_custom_call.1}
  #allocation0 [shape = 'u32[]', space=smem, size = 0x4, offset = 0x4, fixed_abs, tag = 'smem constant byte address 0x4 - core index']
  #allocation1 [shape = 'u32[144,128]{1,0:T(1,128)}', space=vmem, size = 0x12000, scoped, tag = 'internal scratch']
  %s0 = inlined_call_operand.hbm [shape: f32[2,8,32], index: 0, kind: input, shape index: {}]
  %s1 = inlined_call_operand.hbm [shape: f32[2,8,32], index: 1, kind: input, shape index: {}]
  %s2 = inlined_call_operand.hbm [shape: f32[2,8,32], index: 2, kind: input, shape index: {}]
  %s3 = inlined_call_operand.vmem [shape: s8[2,8,8], index: 3, kind: input, shape index: {}]
  %s4 = inlined_call_operand.hbm [shape: f32[32,32], index: 4, kind: input, shape index: {}]
  %s5 = inlined_call_operand.hbm [shape: f32[32,32], index: 5, kind: input, shape index: {}]
  %s6 = inlined_call_operand.vmem [shape: f32[1,32], index: 6, kind: input, shape index: {}]
  %s7 = inlined_call_operand.vmem [shape: f32[1,32], index: 7, kind: input, shape index: {}]
  %s8 = inlined_call_operand.hbm [shape: f32[2,8,32], index: 8, kind: output, shape index: {0}]
  %s9 = inlined_call_operand.hbm [shape: f32[2,8,8], index: 9, kind: output, shape index: {1}]
  %10 = xla_tuple %s8, %s9
  %s11 = sld [smem:[#allocation0]]
  $region93: #{tpu_custom_call.1} parent=0
    _
  %s13 = ssub.s32 1, %s11
  %s14 = scalar_select 0, %s13, %s11
  $region1: #{tpu_custom_call.1} parent=0
    #allocation2 [shape = 'u8[8192]{0}', space=vmem, size = 0x2000, scoped, tag = 'input window, operand 0']
    #allocation3 [shape = 's32[2]{0}', space=sflag, size = 0x8, scoped, tag = 'scoped memory for tpu_custom_call.1']
    #allocation4 [shape = 's32[2]{0}', space=sflag, size = 0x8, scoped, tag = 'scoped memory for tpu_custom_call.1']
    #allocation5 [shape = 'u8[8192]{0}', space=vmem, size = 0x2000, scoped, tag = 'input window, operand 1']
    #allocation6 [shape = 's32[2]{0}', space=sflag, size = 0x8, scoped, tag = 'scoped memory for tpu_custom_call.1']
    #allocation7 [shape = 'u8[8192]{0}', space=vmem, size = 0x2000, scoped, tag = 'input window, operand 2']
    #allocation8 [shape = 'u8[16384]{0}', space=vmem, size = 0x4000, scoped, tag = 'input window, operand 4, single buffered']
    #allocation9 [shape = 's32[1]{0}', space=sflag, size = 0x4, scoped, tag = 'scoped memory for tpu_custom_call.1']
    #allocation10 [shape = 'u8[16384]{0}', space=vmem, size = 0x4000, scoped, tag = 'input window, operand 5, single buffered']
    #allocation11 [shape = 'u8[8192]{0}', space=vmem, size = 0x2000, scoped, tag = 'output window, operand 0']
    #allocation12 [shape = 'u8[8192]{0}', space=vmem, size = 0x2000, scoped, tag = 'output window, operand 1']
    #allocation13 [shape = 's32[2]{0}', space=sflag, size = 0x8, scoped, tag = 'scoped memory for tpu_custom_call.1']
    %15 = vsyncpa [#allocation3], 0
    %s16 = scalar_lea.sflag [#allocation3], 1
    %17 = vsyncpa %s16, 0
    %18 = vsyncpa [#allocation6], 0
    %s19 = scalar_lea.sflag [#allocation6], 1
    %20 = vsyncpa %s19, 0
    %21 = vsyncpa [#allocation9], 0
    %22 = vsyncpa [#allocation4], 0
    %s23 = scalar_lea.sflag [#allocation4], 1
    %24 = vsyncpa %s23, 0
    %25 = vsyncpa [#allocation13], 0
    %s26 = scalar_lea.sflag [#allocation13], 1
    %27 = vsyncpa %s26, 0
    loop: start=0, step=1, limit=4
    $region2: #{tpu_custom_call.1} parent=1 // loop_pre_header
      _
    $region3: #{tpu_custom_call.1} parent=1 // loop_header
      %s29 = sphi 0, %s33
      %p30 = scmp.ge.s32.totalorder %s29, 4
      %s39 = sphi 0, %s41
      %s42 = sphi 0, %s39
      %s43 = sphi 0, %s42
      %s59 = sphi 0, %s43
      %s65 = sphi 0, %s67
      %s68 = sphi 0, %s65
      %s69 = sphi 0, %s68
      %s85 = sphi 0, %s69
      %s91 = sphi 0, %s93
      %s94 = sphi 0, %s91
      %s95 = sphi 0, %s94
      %s111 = sphi 0, %s95
      %s117 = sphi 0, %s119
      %s120 = sphi 0, %s117
      %s121 = sphi 0, %s120
      %s137 = sphi 0, %s121
      %s141 = sphi 0, %s141
      %s143 = sphi 0, %s141
      %s144 = sphi 0, %s143
      %s158 = sphi 0, %s144
      %s162 = sphi 0, %s162
      %s164 = sphi 0, %s162
      %s165 = sphi 0, %s164
      %s179 = sphi 0, %s165
      %s183 = sphi 0, %s183
      %s185 = sphi 0, %s183
      %s186 = sphi 0, %s185
      %s200 = sphi 0, %s186
      %s204 = sphi 0, %s204
      %s206 = sphi 0, %s204
      %s207 = sphi 0, %s206
      %s221 = sphi 0, %s207
      %s227 = sphi 0, %s229
      %s230 = sphi 0, %s227
      %s231 = sphi 0, %s230
      %s247 = sphi 0, %s231
      %s253 = sphi 0, %s255
      %s256 = sphi 0, %s253
      %s257 = sphi 0, %s256
      %s273 = sphi 0, %s257
    $region4: #{tpu_custom_call.1} parent=1 // loop_header_branch
      %32 = sbr.rel (%p30) target = $region8
    $region5: #{tpu_custom_call.1} parent=1 // loop_body
      %s34 = ssub.s32 %s29, 1
      %s35 = ssub.s32 %s29, 2
      %s36 = sadd.s32 %s29, 1
      %s37 = ssub.s32 %s29, %s36
      %p38 = scmp.eq.s32.totalorder %s37, 0
      %s40 = sadd.s32 %s39, 1
      %s41 = scalar_select %p38, %s39, %s40
      %p44 = pneg %p38
      %p45 = scmp.eq.s32.totalorder %s29, 1
      %p46 = por %p44, %p45
      %p47 = scmp.ne.s32.totalorder %s39, %s42
      %p48 = scmp.eq.s32.totalorder %s29, 0
      %p49 = por %p47, %p48
      %p50 = scmp.ne.s32.totalorder %s39, %s42
      %p51 = scmp.eq.s32.totalorder %s34, 1
      %p52 = por %p50, %p51
      %p53 = scmp.ne.s32.totalorder %s42, %s43
      %p54 = scmp.eq.s32.totalorder %s34, 0
      %p55 = por %p53, %p54
      %p56 = scmp.ne.s32.totalorder %s42, %s43
      %p57 = scmp.eq.s32.totalorder %s35, 1
      %p58 = por %p56, %p57
      %p60 = scmp.ne.s32.totalorder %s43, %s59
      %p61 = scmp.eq.s32.totalorder %s35, 0
      %p62 = por %p60, %p61
      %s63 = ssub.s32 %s29, %s36
      %p64 = scmp.eq.s32.totalorder %s63, 0
      %s66 = sadd.s32 %s65, 1
      %s67 = scalar_select %p64, %s65, %s66
      %p70 = pneg %p64
      %p71 = scmp.eq.s32.totalorder %s29, 1
      %p72 = por %p70, %p71
      %p73 = scmp.ne.s32.totalorder %s65, %s68
      %p74 = scmp.eq.s32.totalorder %s29, 0
      %p75 = por %p73, %p74
      %p76 = scmp.ne.s32.totalorder %s65, %s68
      %p77 = scmp.eq.s32.totalorder %s34, 1
      %p78 = por %p76, %p77
      %p79 = scmp.ne.s32.totalorder %s68, %s69
      %p80 = scmp.eq.s32.totalorder %s34, 0
      %p81 = por %p79, %p80
      %p82 = scmp.ne.s32.totalorder %s68, %s69
      %p83 = scmp.eq.s32.totalorder %s35, 1
      %p84 = por %p82, %p83
      %p86 = scmp.ne.s32.totalorder %s69, %s85
      %p87 = scmp.eq.s32.totalorder %s35, 0
      %p88 = por %p86, %p87
      %s89 = ssub.s32 %s29, %s36
      %p90 = scmp.eq.s32.totalorder %s89, 0
      %s92 = sadd.s32 %s91, 1
      %s93 = scalar_select %p90, %s91, %s92
      %p96 = pneg %p90
      %p97 = scmp.eq.s32.totalorder %s29, 1
      %p98 = por %p96, %p97
      %p99 = scmp.ne.s32.totalorder %s91, %s94
      %p100 = scmp.eq.s32.totalorder %s29, 0
      %p101 = por %p99, %p100
      %p102 = scmp.ne.s32.totalorder %s91, %s94
      %p103 = scmp.eq.s32.totalorder %s34, 1
      %p104 = por %p102, %p103
      %p105 = scmp.ne.s32.totalorder %s94, %s95
      %p106 = scmp.eq.s32.totalorder %s34, 0
      %p107 = por %p105, %p106
      %p108 = scmp.ne.s32.totalorder %s94, %s95
      %p109 = scmp.eq.s32.totalorder %s35, 1
      %p110 = por %p108, %p109
      %p112 = scmp.ne.s32.totalorder %s95, %s111
      %p113 = scmp.eq.s32.totalorder %s35, 0
      %p114 = por %p112, %p113
      %s115 = ssub.s32 %s29, %s36
      %p116 = scmp.eq.s32.totalorder %s115, 0
      %s118 = sadd.s32 %s117, 1
      %s119 = scalar_select %p116, %s117, %s118
      %p122 = pneg %p116
      %p123 = scmp.eq.s32.totalorder %s29, 1
      %p124 = por %p122, %p123
      %p125 = scmp.ne.s32.totalorder %s117, %s120
      %p126 = scmp.eq.s32.totalorder %s29, 0
      %p127 = por %p125, %p126
      %p128 = scmp.ne.s32.totalorder %s117, %s120
      %p129 = scmp.eq.s32.totalorder %s34, 1
      %p130 = por %p128, %p129
      %p131 = scmp.ne.s32.totalorder %s120, %s121
      %p132 = scmp.eq.s32.totalorder %s34, 0
      %p133 = por %p131, %p132
      %p134 = scmp.ne.s32.totalorder %s120, %s121
      %p135 = scmp.eq.s32.totalorder %s35, 1
      %p136 = por %p134, %p135
      %p138 = scmp.ne.s32.totalorder %s121, %s137
      %p139 = scmp.eq.s32.totalorder %s35, 0
      %p140 = por %p138, %p139
      %s142 = sadd.s32 %s141, 1
      %p145 = scmp.eq.s32.totalorder %s29, 1
      %p146 = scmp.ne.s32.totalorder %s141, %s143
      %p147 = scmp.eq.s32.totalorder %s29, 0
      %p148 = por %p146, %p147
      %p149 = scmp.ne.s32.totalorder %s141, %s143
      %p150 = scmp.eq.s32.totalorder %s34, 1
      %p151 = por %p149, %p150
      %p152 = scmp.ne.s32.totalorder %s143, %s144
      %p153 = scmp.eq.s32.totalorder %s34, 0
      %p154 = por %p152, %p153
      %p155 = scmp.ne.s32.totalorder %s143, %s144
      %p156 = scmp.eq.s32.totalorder %s35, 1
      %p157 = por %p155, %p156
      %p159 = scmp.ne.s32.totalorder %s144, %s158
      %p160 = scmp.eq.s32.totalorder %s35, 0
      %p161 = por %p159, %p160
      %s163 = sadd.s32 %s162, 1
      %p166 = scmp.eq.s32.totalorder %s29, 1
      %p167 = scmp.ne.s32.totalorder %s162, %s164
      %p168 = scmp.eq.s32.totalorder %s29, 0
      %p169 = por %p167, %p168
      %p170 = scmp.ne.s32.totalorder %s162, %s164
      %p171 = scmp.eq.s32.totalorder %s34, 1
      %p172 = por %p170, %p171
      %p173 = scmp.ne.s32.totalorder %s164, %s165
      %p174 = scmp.eq.s32.totalorder %s34, 0
      %p175 = por %p173, %p174
      %p176 = scmp.ne.s32.totalorder %s164, %s165
      %p177 = scmp.eq.s32.totalorder %s35, 1
      %p178 = por %p176, %p177
      %p180 = scmp.ne.s32.totalorder %s165, %s179
      %p181 = scmp.eq.s32.totalorder %s35, 0
      %p182 = por %p180, %p181
      %s184 = sadd.s32 %s183, 1
      %p187 = scmp.eq.s32.totalorder %s29, 1
      %p188 = scmp.ne.s32.totalorder %s183, %s185
      %p189 = scmp.eq.s32.totalorder %s29, 0
      %p190 = por %p188, %p189
      %p191 = scmp.ne.s32.totalorder %s183, %s185
      %p192 = scmp.eq.s32.totalorder %s34, 1
      %p193 = por %p191, %p192
      %p194 = scmp.ne.s32.totalorder %s185, %s186
      %p195 = scmp.eq.s32.totalorder %s34, 0
      %p196 = por %p194, %p195
      %p197 = scmp.ne.s32.totalorder %s185, %s186
      %p198 = scmp.eq.s32.totalorder %s35, 1
      %p199 = por %p197, %p198
      %p201 = scmp.ne.s32.totalorder %s186, %s200
      %p202 = scmp.eq.s32.totalorder %s35, 0
      %p203 = por %p201, %p202
      %s205 = sadd.s32 %s204, 1
      %p208 = scmp.eq.s32.totalorder %s29, 1
      %p209 = scmp.ne.s32.totalorder %s204, %s206
      %p210 = scmp.eq.s32.totalorder %s29, 0
      %p211 = por %p209, %p210
      %p212 = scmp.ne.s32.totalorder %s204, %s206
      %p213 = scmp.eq.s32.totalorder %s34, 1
      %p214 = por %p212, %p213
      %p215 = scmp.ne.s32.totalorder %s206, %s207
      %p216 = scmp.eq.s32.totalorder %s34, 0
      %p217 = por %p215, %p216
      %p218 = scmp.ne.s32.totalorder %s206, %s207
      %p219 = scmp.eq.s32.totalorder %s35, 1
      %p220 = por %p218, %p219
      %p222 = scmp.ne.s32.totalorder %s207, %s221
      %p223 = scmp.eq.s32.totalorder %s35, 0
      %p224 = por %p222, %p223
      %s225 = ssub.s32 %s29, %s36
      %p226 = scmp.eq.s32.totalorder %s225, 0
      %s228 = sadd.s32 %s227, 1
      %s229 = scalar_select %p226, %s227, %s228
      %p232 = pneg %p226
      %p233 = scmp.eq.s32.totalorder %s29, 1
      %p234 = por %p232, %p233
      %p235 = scmp.ne.s32.totalorder %s227, %s230
      %p236 = scmp.eq.s32.totalorder %s29, 0
      %p237 = por %p235, %p236
      %p238 = scmp.ne.s32.totalorder %s227, %s230
      %p239 = scmp.eq.s32.totalorder %s34, 1
      %p240 = por %p238, %p239
      %p241 = scmp.ne.s32.totalorder %s230, %s231
      %p242 = scmp.eq.s32.totalorder %s34, 0
      %p243 = por %p241, %p242
      %p244 = scmp.ne.s32.totalorder %s230, %s231
      %p245 = scmp.eq.s32.totalorder %s35, 1
      %p246 = por %p244, %p245
      %p248 = scmp.ne.s32.totalorder %s231, %s247
      %p249 = scmp.eq.s32.totalorder %s35, 0
      %p250 = por %p248, %p249
      %s251 = ssub.s32 %s29, %s36
      %p252 = scmp.eq.s32.totalorder %s251, 0
      %s254 = sadd.s32 %s253, 1
      %s255 = scalar_select %p252, %s253, %s254
      %p258 = pneg %p252
      %p259 = scmp.eq.s32.totalorder %s29, 1
      %p260 = por %p258, %p259
      %p261 = scmp.ne.s32.totalorder %s253, %s256
      %p262 = scmp.eq.s32.totalorder %s29, 0
      %p263 = por %p261, %p262
      %p264 = scmp.ne.s32.totalorder %s253, %s256
      %p265 = scmp.eq.s32.totalorder %s34, 1
      %p266 = por %p264, %p265
      %p267 = scmp.ne.s32.totalorder %s256, %s257
      %p268 = scmp.eq.s32.totalorder %s34, 0
      %p269 = por %p267, %p268
      %p270 = scmp.ne.s32.totalorder %s256, %s257
      %p271 = scmp.eq.s32.totalorder %s35, 1
      %p272 = por %p270, %p271
      %p274 = scmp.ne.s32.totalorder %s257, %s273
      %p275 = scmp.eq.s32.totalorder %s35, 0
      %p276 = por %p274, %p275
      %p277 = scmp.le.s32.totalorder 1, %s29
      %p278 = scmp.lt.s32.totalorder %s29, 3
      %p279 = pnand %p277, %p278
      %p280 = pneg %p279
      // Predicated region
      $region9: #{tpu_custom_call.1} parent=5 // pred_check
        _
      $region10: #{tpu_custom_call.1} parent=5 // pred_check_branch
        %282 = sbr.rel (%p279) target = $region12
      $region11: #{tpu_custom_call.1} parent=5 // pred_region
        %s283 = ssub.s32 %s29, 1
        // Predicated region
        $region13: #{tpu_custom_call.1} parent=11 // pred_check
          %p284 = pneg %p154
        $region14: #{tpu_custom_call.1} parent=11 // pred_check_branch
          %286 = sbr.rel (%p284) target = $region16
        $region15: #{tpu_custom_call.1} parent=11 // pred_region
          %s288 = ssub.s32 512, 512
          %289 = vsyncadd [#allocation9], %s288
          %s290 = sshll.u32 [#allocation8], 4
          %s291 = int_to_ptr.vmem [resolvable:$true] %s290
          %296 = dma.hbm_to_vmem [thread:$0]  %s4, 512, %s291, [#allocation9], 128, 128, 8
        $region16: #{tpu_custom_call.1} parent=11 // pred_fallthru
          _
        // Predicated region
        $region17: #{tpu_custom_call.1} parent=11 // pred_check
          %p297 = pneg %p175
        $region18: #{tpu_custom_call.1} parent=11 // pred_check_branch
          %299 = sbr.rel (%p297) target = $region20
        $region19: #{tpu_custom_call.1} parent=11 // pred_region
          %s301 = ssub.s32 512, 512
          %302 = vsyncadd [#allocation9], %s301
          %s303 = sshll.u32 [#allocation10], 4
          %s304 = int_to_ptr.vmem [resolvable:$true] %s303
          %309 = dma.hbm_to_vmem [thread:$0]  %s5, 512, %s304, [#allocation9], 128, 128, 8
        $region20: #{tpu_custom_call.1} parent=11 // pred_fallthru
          _
        // Predicated region
        $region21: #{tpu_custom_call.1} parent=11 // pred_check
          %p310 = pneg %p196
        $region22: #{tpu_custom_call.1} parent=11 // pred_check_branch
          %312 = sbr.rel (%p310) target = $region24
        $region23: #{tpu_custom_call.1} parent=11 // pred_region
          _
        $region24: #{tpu_custom_call.1} parent=11 // pred_fallthru
          _
        // Predicated region
        $region25: #{tpu_custom_call.1} parent=11 // pred_check
          %p313 = pneg %p217
        $region26: #{tpu_custom_call.1} parent=11 // pred_check_branch
          %315 = sbr.rel (%p313) target = $region28
        $region27: #{tpu_custom_call.1} parent=11 // pred_region
          _
        $region28: #{tpu_custom_call.1} parent=11 // pred_fallthru
          _
      $region12: #{tpu_custom_call.1} parent=5 // pred_fallthru
        _
      %p316 = scmp.lt.s32.totalorder %s29, 2
      // Predicated region
      $region29: #{tpu_custom_call.1} parent=5 // pred_check
        %p317 = pneg %p316
      $region30: #{tpu_custom_call.1} parent=5 // pred_check_branch
        %319 = sbr.rel (%p317) target = $region32
      $region31: #{tpu_custom_call.1} parent=5 // pred_region
        // Predicated region
        $region33: #{tpu_custom_call.1} parent=31 // pred_check
          %p320 = pneg %p49
        $region34: #{tpu_custom_call.1} parent=31 // pred_check_branch
          %322 = sbr.rel (%p320) target = $region36
        $region35: #{tpu_custom_call.1} parent=31 // pred_region
          %s323 = sand.u32 %s39, 1
          %s324 = scalar_lea.sflag [#allocation3], %s323
          %s325 = sand.u32 %s39, 1
          %s326 = smul.addr %s325, 8
          %s327 = scalar_lea.vmem [#allocation2], %s326
          %s329 = ssub.s32 128, 128
          %330 = vsyncadd %s324, %s329
          %s331 = smul.addr %s29, 128
          %s332 = scalar_lea.hbm %s0, %s331
          %s334 = sshll.u32 %s327, 4
          %s335 = int_to_ptr.vmem [resolvable:$true] %s334
          %337 = dma.hbm_to_vmem [thread:$0]  %s332, 128, %s335, %s324
        $region36: #{tpu_custom_call.1} parent=31 // pred_fallthru
          _
        // Predicated region
        $region37: #{tpu_custom_call.1} parent=31 // pred_check
          %p338 = pneg %p75
        $region38: #{tpu_custom_call.1} parent=31 // pred_check_branch
          %340 = sbr.rel (%p338) target = $region40
        $region39: #{tpu_custom_call.1} parent=31 // pred_region
          %s341 = sand.u32 %s29, 1
          %s342 = scalar_lea.sflag [#allocation6], %s341
          %s343 = sand.u32 %s65, 1
          %s344 = smul.addr %s343, 8
          %s345 = scalar_lea.vmem [#allocation5], %s344
          %s347 = ssub.s32 128, 128
          %348 = vsyncadd %s342, %s347
          %s349 = smul.addr %s29, 128
          %s350 = scalar_lea.hbm %s1, %s349
          %s352 = sshll.u32 %s345, 4
          %s353 = int_to_ptr.vmem [resolvable:$true] %s352
          %355 = dma.hbm_to_vmem [thread:$0]  %s350, 128, %s353, %s342
        $region40: #{tpu_custom_call.1} parent=31 // pred_fallthru
          _
        // Predicated region
        $region41: #{tpu_custom_call.1} parent=31 // pred_check
          %p356 = pneg %p101
        $region42: #{tpu_custom_call.1} parent=31 // pred_check_branch
          %358 = sbr.rel (%p356) target = $region44
        $region43: #{tpu_custom_call.1} parent=31 // pred_region
          %s359 = sand.u32 %s29, 1
          %s360 = scalar_lea.sflag [#allocation6], %s359
          %s361 = sand.u32 %s91, 1
          %s362 = smul.addr %s361, 8
          %s363 = scalar_lea.vmem [#allocation7], %s362
          %s365 = ssub.s32 128, 128
          %366 = vsyncadd %s360, %s365
          %s367 = smul.addr %s29, 128
          %s368 = scalar_lea.hbm %s2, %s367
          %s370 = sshll.u32 %s363, 4
          %s371 = int_to_ptr.vmem [resolvable:$true] %s370
          %373 = dma.hbm_to_vmem [thread:$0]  %s368, 128, %s371, %s360
        $region44: #{tpu_custom_call.1} parent=31 // pred_fallthru
          _
        // Predicated region
        $region45: #{tpu_custom_call.1} parent=31 // pred_check
          %p374 = pneg %p127
        $region46: #{tpu_custom_call.1} parent=31 // pred_check_branch
          %376 = sbr.rel (%p374) target = $region48
        $region47: #{tpu_custom_call.1} parent=31 // pred_region
          %p377 = scmp.lt.s32.totalorder %s29, 1
          %s378 = scalar_select %p377, %s29, 1
          %s379 = smul.addr %s378, 2
          %s380 = scalar_lea.vmem %s3, %s379
        $region48: #{tpu_custom_call.1} parent=31 // pred_fallthru
          _
      $region32: #{tpu_custom_call.1} parent=5 // pred_fallthru
        _
      %p381 = scmp.le.s32.totalorder 1, %s29
      %p382 = scmp.lt.s32.totalorder %s29, 3
      %p383 = pnand %p381, %p382
      %p384 = pneg %p383
      // Predicated region
      $region49: #{tpu_custom_call.1} parent=5 // pred_check
        _
      $region50: #{tpu_custom_call.1} parent=5 // pred_check_branch
        %386 = sbr.rel (%p383) target = $region52
      $region51: #{tpu_custom_call.1} parent=5 // pred_region
        %s387 = ssub.s32 %s29, 1
        %s388 = sand.u32 %s42, 1
        %s389 = scalar_lea.sflag [#allocation3], %s388
        %s390 = sand.u32 %s42, 1
        %s391 = smul.addr %s390, 8
        %s392 = scalar_lea.vmem [#allocation2], %s391
        // Predicated region
        $region53: #{tpu_custom_call.1} parent=51 // pred_check
          %p393 = pneg %p55
        $region54: #{tpu_custom_call.1} parent=51 // pred_check_branch
          %395 = sbr.rel (%p393) target = $region56
        $region55: #{tpu_custom_call.1} parent=51 // pred_region
          %396 = dma.done %s389, 128
        $region56: #{tpu_custom_call.1} parent=51 // pred_fallthru
          _
        %s397 = sand.u32 %s34, 1
        %s398 = scalar_lea.sflag [#allocation6], %s397
        %s399 = sand.u32 %s68, 1
        %s400 = smul.addr %s399, 8
        %s401 = scalar_lea.vmem [#allocation5], %s400
        // Predicated region
        $region57: #{tpu_custom_call.1} parent=51 // pred_check
          %p402 = pneg %p81
        $region58: #{tpu_custom_call.1} parent=51 // pred_check_branch
          %404 = sbr.rel (%p402) target = $region60
        $region59: #{tpu_custom_call.1} parent=51 // pred_region
          %405 = dma.done %s398, 128
        $region60: #{tpu_custom_call.1} parent=51 // pred_fallthru
          _
        %s406 = sand.u32 %s34, 1
        %s407 = scalar_lea.sflag [#allocation6], %s406
        %s408 = sand.u32 %s94, 1
        %s409 = smul.addr %s408, 8
        %s410 = scalar_lea.vmem [#allocation7], %s409
        // Predicated region
        $region61: #{tpu_custom_call.1} parent=51 // pred_check
          %p411 = pneg %p107
        $region62: #{tpu_custom_call.1} parent=51 // pred_check_branch
          %413 = sbr.rel (%p411) target = $region64
        $region63: #{tpu_custom_call.1} parent=51 // pred_region
          %414 = dma.done %s407, 128
        $region64: #{tpu_custom_call.1} parent=51 // pred_fallthru
          _
        // Predicated region
        $region65: #{tpu_custom_call.1} parent=51 // pred_check
          %p415 = pneg %p154
        $region66: #{tpu_custom_call.1} parent=51 // pred_check_branch
          %417 = sbr.rel (%p415) target = $region68
        $region67: #{tpu_custom_call.1} parent=51 // pred_region
          %418 = dma.done [#allocation9], 512
        $region68: #{tpu_custom_call.1} parent=51 // pred_fallthru
          _
        // Predicated region
        $region69: #{tpu_custom_call.1} parent=51 // pred_check
          %p419 = pneg %p175
        $region70: #{tpu_custom_call.1} parent=51 // pred_check_branch
          %421 = sbr.rel (%p419) target = $region72
        $region71: #{tpu_custom_call.1} parent=51 // pred_region
          %422 = dma.done [#allocation9], 512
        $region72: #{tpu_custom_call.1} parent=51 // pred_fallthru
          _
        %s423 = sand.u32 %s42, 1
        %s424 = scalar_lea.sflag [#allocation3], %s423
        %s425 = sand.u32 %s42, 1
        %s426 = smul.addr %s425, 8
        %s427 = scalar_lea.vmem [#allocation2], %s426
        %p428 = pneg %p55
        %p429 = pneg %p52
        %s430 = sand.u32 %s34, 1
        %s431 = scalar_lea.sflag [#allocation6], %s430
        %s432 = sand.u32 %s68, 1
        %s433 = smul.addr %s432, 8
        %s434 = scalar_lea.vmem [#allocation5], %s433
        %p435 = pneg %p81
        %p436 = pneg %p78
        %s437 = sand.u32 %s34, 1
        %s438 = scalar_lea.sflag [#allocation6], %s437
        %s439 = sand.u32 %s94, 1
        %s440 = smul.addr %s439, 8
        %s441 = scalar_lea.vmem [#allocation7], %s440
        %p442 = pneg %p107
        %p443 = pneg %p104
        %p444 = scmp.lt.s32.totalorder %s34, 1
        %s445 = scalar_select %p444, %s34, 1
        %s446 = smul.addr %s445, 2
        %s447 = scalar_lea.vmem %s3, %s446
        %p448 = pneg %p133
        %p449 = pneg %p130
        %p450 = pneg %p154
        %p451 = pneg %p151
        %p452 = pneg %p175
        %p453 = pneg %p172
        %p454 = pneg %p196
        %p455 = pneg %p193
        %p456 = pneg %p217
        %p457 = pneg %p214
        %p458 = pneg %p243
        %p459 = pneg %p240
        %s460 = sand.u32 %s230, 1
        %s461 = scalar_lea.sflag [#allocation4], %s460
        %s462 = sand.u32 %s230, 1
        %s463 = smul.addr %s462, 8
        %s464 = scalar_lea.vmem [#allocation11], %s463
        %p465 = pneg %p269
        %p466 = pneg %p266
        %s467 = sand.u32 %s256, 1
        %s468 = scalar_lea.sflag [#allocation13], %s467
        %s469 = sand.u32 %s256, 1
        %s470 = smul.addr %s469, 8
        %s471 = scalar_lea.vmem [#allocation12], %s470
        %p472 = scmp.lt.s32.totalorder %s34, 1
        %s473 = scalar_select %p472, %s34, 1
        %s474 = smul.addr %s473, 2
        %s475 = scalar_lea.vmem %s3, %s474
        %v478 = vld [vmem:[%s392] sm:$0xff]
        %v479 = vld [vmem:[%s401] sm:$0xff]
        %v480 = vld [vmem:[%s410] sm:$0xff]
        %v481 = vld [vmem:[%s475] sm:$0x3]
        %vm482 = vnez %v481
        %v483 = vld [vmem:[#allocation8] sm:$0xff]
        %v484 = vld [vmem:[#allocation8 + $0x8] sm:$0xff]
        %v485 = vld [vmem:[#allocation8 + $0x10] sm:$0xff]
        %v486 = vld [vmem:[#allocation8 + $0x18] sm:$0xff]
        %vm487 = vcmask 261120
        %v489 = vsel %vm487, %v478, 0
        %491 = vmatprep.subr.mxu0 0.0
        %492 = vmatpush1.msra.mxu0 %v483
        %493 = vmatprep.subr.mxu0 0.0
        %494 = vmatpush1.msra.mxu0 %v484
        %495 = vmatprep.subr.mxu0 0.0
        %496 = vmatpush1.msra.mxu0 %v485
        %497 = vmatprep.subr.mxu0 0.0
        %498 = vmatpush1.msra.mxu0 %v486
        %499 = vmatprep.subr.mxu0 0.0
        %500 = vmatpush1.msra.mxu0 0.0
        %501 = vmatprep.subr.mxu0 0.0
        %502 = vmatpush1.msra.mxu0 0.0
        %503 = vmatprep.subr.mxu0 0.0
        %504 = vmatpush1.msra.mxu0 0.0
        %505 = vmatprep.subr.mxu0 0.0
        %506 = vmatpush1.msra.mxu0 0.0
        %507 = vmatprep.subr.mxu0 0.0
        %508 = vmatpush1.msra.mxu0 0.0
        %509 = vmatprep.subr.mxu0 0.0
        %510 = vmatpush1.msra.mxu0 0.0
        %511 = vmatprep.subr.mxu0 0.0
        %512 = vmatpush1.msra.mxu0 0.0
        %513 = vmatprep.subr.mxu0 0.0
        %514 = vmatpush1.msra.mxu0 0.0
        %515 = vmatprep.subr.mxu0 0.0
        %516 = vmatpush1.msra.mxu0 0.0
        %517 = vmatprep.subr.mxu0 0.0
        %518 = vmatpush1.msra.mxu0 0.0
        %519 = vmatprep.subr.mxu0 0.0
        %520 = vmatpush1.msra.mxu0 0.0
        %521 = vmatprep.subr.mxu0 0.0
        %522 = vmatpush1.msra.mxu0 0.0
        %523 = vmatprep.subr.mxu0 0.0
        %524 = vmatpush1.msra.mxu0 0.0
        %525 = vmatprep.subr.mxu0 0.0
        %526 = vmatpush1.msra.mxu0 0.0
        %527 = vmatprep.subr.mxu0 0.0
        %528 = vmatpush1.msra.mxu0 0.0
        %529 = vmatprep.subr.mxu0 0.0
        %530 = vmatpush1.msra.mxu0 0.0
        %531 = vmatprep.subr.mxu0 0.0
        %532 = vmatpush1.msra.mxu0 0.0
        %533 = vmatprep.subr.mxu0 0.0
        %534 = vmatpush1.msra.mxu0 0.0
        %535 = vmatprep.subr.mxu0 0.0
        %536 = vmatpush1.msra.mxu0 0.0
        %537 = vmatprep.subr.mxu0 0.0
        %538 = vmatpush1.msra.mxu0 0.0
        %539 = vmatprep.subr.mxu0 0.0
        %540 = vmatpush1.msra.mxu0 0.0
        %541 = vmatprep.subr.mxu0 0.0
        %542 = vmatpush1.msra.mxu0 0.0
        %543 = vmatprep.subr.mxu0 0.0
        %544 = vmatpush1.msra.mxu0 0.0
        %545 = vmatprep.subr.mxu0 0.0
        %546 = vmatpush1.msra.mxu0 0.0
        %547 = vmatprep.subr.mxu0 0.0
        %548 = vmatpush1.msra.mxu0 0.0
        %549 = vmatprep.subr.mxu0 0.0
        %550 = vmatpush1.msra.mxu0 0.0
        %551 = vmatprep.subr.mxu0 0.0
        %552 = vmatpush1.msra.mxu0 0.0
        %553 = vmatprep.subr.mxu0 0.0
        %554 = vmatpush1.msra.mxu0 0.0
        %555 = vmatprep.mubr.f32.mxu0 0.0
        %556 = vmatmul.mubr.f32.gmra.mrb[0].mxu0 %v489
        %v557 = vpop.f32.mrb[0].mxu0
        %v558 = vadd.f32 0.0, %v557
        %v559 = vpop.f32.mrb[0].mxu0
        %560 = vdwg.mxu0
        %vm561 = vcmask 64512
        %v563 = vsel %vm561, %v558, 0
        %v566 = vsel %vm561, %v479, 0
        %568 = vmatprep.subr.mxu0 0.0
        %569 = vmatpush1.xpose.msra.mxu0 %v566
        %570 = vmatprep.subr.mxu0 0.0
        %571 = vmatpush1.xpose.msra.mxu0 0.0
        %572 = vmatprep.subr.mxu0 0.0
        %573 = vmatpush1.xpose.msra.mxu0 0.0
        %574 = vmatprep.subr.mxu0 0.0
        %575 = vmatpush1.xpose.msra.mxu0 0.0
        %576 = vmatprep.subr.mxu0 0.0
        %577 = vmatpush1.xpose.msra.mxu0 0.0
        %578 = vmatprep.subr.mxu0 0.0
        %579 = vmatpush1.xpose.msra.mxu0 0.0
        %580 = vmatprep.subr.mxu0 0.0
        %581 = vmatpush1.xpose.msra.mxu0 0.0
        %582 = vmatprep.subr.mxu0 0.0
        %583 = vmatpush1.xpose.msra.mxu0 0.0
        %584 = vmatprep.subr.mxu0 0.0
        %585 = vmatpush1.xpose.msra.mxu0 0.0
        %586 = vmatprep.subr.mxu0 0.0
        %587 = vmatpush1.xpose.msra.mxu0 0.0
        %588 = vmatprep.subr.mxu0 0.0
        %589 = vmatpush1.xpose.msra.mxu0 0.0
        %590 = vmatprep.subr.mxu0 0.0
        %591 = vmatpush1.xpose.msra.mxu0 0.0
        %592 = vmatprep.subr.mxu0 0.0
        %593 = vmatpush1.xpose.msra.mxu0 0.0
        %594 = vmatprep.subr.mxu0 0.0
        %595 = vmatpush1.xpose.msra.mxu0 0.0
        %596 = vmatprep.subr.mxu0 0.0
        %597 = vmatpush1.xpose.msra.mxu0 0.0
        %598 = vmatprep.subr.mxu0 0.0
        %599 = vmatpush1.xpose.msra.mxu0 0.0
        %600 = vmatprep.subr.mxu0 0.0
        %601 = vmatpush1.xpose.msra.mxu0 0.0
        %602 = vmatprep.subr.mxu0 0.0
        %603 = vmatpush1.xpose.msra.mxu0 0.0
        %604 = vmatprep.subr.mxu0 0.0
        %605 = vmatpush1.xpose.msra.mxu0 0.0
        %606 = vmatprep.subr.mxu0 0.0
        %607 = vmatpush1.xpose.msra.mxu0 0.0
        %608 = vmatprep.subr.mxu0 0.0
        %609 = vmatpush1.xpose.msra.mxu0 0.0
        %610 = vmatprep.subr.mxu0 0.0
        %611 = vmatpush1.xpose.msra.mxu0 0.0
        %612 = vmatprep.subr.mxu0 0.0
        %613 = vmatpush1.xpose.msra.mxu0 0.0
        %614 = vmatprep.subr.mxu0 0.0
        %615 = vmatpush1.xpose.msra.mxu0 0.0
        %616 = vmatprep.subr.mxu0 0.0
        %617 = vmatpush1.xpose.msra.mxu0 0.0
        %618 = vmatprep.subr.mxu0 0.0
        %619 = vmatpush1.xpose.msra.mxu0 0.0
        %620 = vmatprep.subr.mxu0 0.0
        %621 = vmatpush1.xpose.msra.mxu0 0.0
        %622 = vmatprep.subr.mxu0 0.0
        %623 = vmatpush1.xpose.msra.mxu0 0.0
        %624 = vmatprep.subr.mxu0 0.0
        %625 = vmatpush1.xpose.msra.mxu0 0.0
        %626 = vmatprep.subr.mxu0 0.0
        %627 = vmatpush1.xpose.msra.mxu0 0.0
        %628 = vmatprep.subr.mxu0 0.0
        %629 = vmatpush1.xpose.msra.mxu0 0.0
        %630 = vmatprep.subr.mxu0 0.0
        %631 = vmatpush1.xpose.msra.mxu0 0.0
        %632 = vmatprep.mubr.f32.mxu0 0.0
        %633 = vmatmul.mubr.f32.gmra.mrb[0].mxu0 %v563
        %v634 = vpop.f32.mrb[0].mxu0
        %v635 = vadd.f32 0.0, %v634
        %v636 = vpop.f32.mrb[0].mxu0
        %637 = vdwg.mxu0
        %v638 = vmul.f32 %v635, 0.35355338
        %v639 = vsel %vm482, 16843009, 0
        %v640 = vunpack.c.0.s8 %v639
        %vm641 = vcmp.ne.s32.totalorder %v640, 0
        %v642 = vsel %vm641, -1e+30, %v638
        %v643 = vsel %vm561, %v642, -inf
        %644 = vmax.xlane.f32.xlu0 %v643
        %v645 = vpop.xlane.xlu0 %644
        %v646 = vsub.f32 %v642, %v645
        %v647 = vmul.f32 %v646, 1.442695
        %v648 = vpow.pop %v647
        %v649 = vsel %vm561, %v648, 0.0
        %650 = vadd.xlane.f32.xlu0 %v649
        %v651 = vpop.xlane.xlu0 %650
        %v652 = vrcp.pop %v651
        %v653 = vmul.f32 %v648, %v652
        %v654 = vadd.f32 %v653, 0.0
        %v656 = vsel %vm561, %v653, 0
        %658 = vmatprep.subr.mxu0 0.0
        %659 = vmatpush1.msra.mxu0 %v480
        %660 = vmatprep.subr.mxu0 0.0
        %661 = vmatpush1.msra.mxu0 0.0
        %662 = vmatprep.subr.mxu0 0.0
        %663 = vmatpush1.msra.mxu0 0.0
        %664 = vmatprep.subr.mxu0 0.0
        %665 = vmatpush1.msra.mxu0 0.0
        %666 = vmatprep.subr.mxu0 0.0
        %667 = vmatpush1.msra.mxu0 0.0
        %668 = vmatprep.subr.mxu0 0.0
        %669 = vmatpush1.msra.mxu0 0.0
        %670 = vmatprep.subr.mxu0 0.0
        %671 = vmatpush1.msra.mxu0 0.0
        %672 = vmatprep.subr.mxu0 0.0
        %673 = vmatpush1.msra.mxu0 0.0
        %674 = vmatprep.subr.mxu0 0.0
        %675 = vmatpush1.msra.mxu0 0.0
        %676 = vmatprep.subr.mxu0 0.0
        %677 = vmatpush1.msra.mxu0 0.0
        %678 = vmatprep.subr.mxu0 0.0
        %679 = vmatpush1.msra.mxu0 0.0
        %680 = vmatprep.subr.mxu0 0.0
        %681 = vmatpush1.msra.mxu0 0.0
        %682 = vmatprep.subr.mxu0 0.0
        %683 = vmatpush1.msra.mxu0 0.0
        %684 = vmatprep.subr.mxu0 0.0
        %685 = vmatpush1.msra.mxu0 0.0
        %686 = vmatprep.subr.mxu0 0.0
        %687 = vmatpush1.msra.mxu0 0.0
        %688 = vmatprep.subr.mxu0 0.0
        %689 = vmatpush1.msra.mxu0 0.0
        %690 = vmatprep.subr.mxu0 0.0
        %691 = vmatpush1.msra.mxu0 0.0
        %692 = vmatprep.subr.mxu0 0.0
        %693 = vmatpush1.msra.mxu0 0.0
        %694 = vmatprep.subr.mxu0 0.0
        %695 = vmatpush1.msra.mxu0 0.0
        %696 = vmatprep.subr.mxu0 0.0
        %697 = vmatpush1.msra.mxu0 0.0
        %698 = vmatprep.subr.mxu0 0.0
        %699 = vmatpush1.msra.mxu0 0.0
        %700 = vmatprep.subr.mxu0 0.0
        %701 = vmatpush1.msra.mxu0 0.0
        %702 = vmatprep.subr.mxu0 0.0
        %703 = vmatpush1.msra.mxu0 0.0
        %704 = vmatprep.subr.mxu0 0.0
        %705 = vmatpush1.msra.mxu0 0.0
        %706 = vmatprep.subr.mxu0 0.0
        %707 = vmatpush1.msra.mxu0 0.0
        %708 = vmatprep.subr.mxu0 0.0
        %709 = vmatpush1.msra.mxu0 0.0
        %710 = vmatprep.subr.mxu0 0.0
        %711 = vmatpush1.msra.mxu0 0.0
        %712 = vmatprep.subr.mxu0 0.0
        %713 = vmatpush1.msra.mxu0 0.0
        %714 = vmatprep.subr.mxu0 0.0
        %715 = vmatpush1.msra.mxu0 0.0
        %716 = vmatprep.subr.mxu0 0.0
        %717 = vmatpush1.msra.mxu0 0.0
        %718 = vmatprep.subr.mxu0 0.0
        %719 = vmatpush1.msra.mxu0 0.0
        %720 = vmatprep.subr.mxu0 0.0
        %721 = vmatpush1.msra.mxu0 0.0
        %722 = vmatprep.mubr.f32.mxu0 0.0
        %723 = vmatmul.mubr.f32.gmra.mrb[0].mxu0 %v656
        %v724 = vpop.f32.mrb[0].mxu0
        %v725 = vadd.f32 0.0, %v724
        %v726 = vpop.f32.mrb[0].mxu0
        %727 = vdwg.mxu0
        %v728 = vld [vmem:[#allocation10] sm:$0xff]
        %729 = vrot.lane.b32.xlu0 %v558, 120
        %v730 = vpop.permute.xlu0 %729
        %731 = vrot.lane.b32.xlu0 %v479, 120
        %v732 = vpop.permute.xlu0 %731
        %v733 = vsel %vm561, %v730, 0
        %v735 = vsel %vm561, %v732, 0
        %737 = vmatprep.subr.mxu0 0.0
        %738 = vmatpush1.xpose.msra.mxu0 %v735
        %739 = vmatprep.subr.mxu0 0.0
        %740 = vmatpush1.xpose.msra.mxu0 0.0
        %741 = vmatprep.subr.mxu0 0.0
        %742 = vmatpush1.xpose.msra.mxu0 0.0
        %743 = vmatprep.subr.mxu0 0.0
        %744 = vmatpush1.xpose.msra.mxu0 0.0
        %745 = vmatprep.subr.mxu0 0.0
        %746 = vmatpush1.xpose.msra.mxu0 0.0
        %747 = vmatprep.subr.mxu0 0.0
        %748 = vmatpush1.xpose.msra.mxu0 0.0
        %749 = vmatprep.subr.mxu0 0.0
        %750 = vmatpush1.xpose.msra.mxu0 0.0
        %751 = vmatprep.subr.mxu0 0.0
        %752 = vmatpush1.xpose.msra.mxu0 0.0
        %753 = vmatprep.subr.mxu0 0.0
        %754 = vmatpush1.xpose.msra.mxu0 0.0
        %755 = vmatprep.subr.mxu0 0.0
        %756 = vmatpush1.xpose.msra.mxu0 0.0
        %757 = vmatprep.subr.mxu0 0.0
        %758 = vmatpush1.xpose.msra.mxu0 0.0
        %759 = vmatprep.subr.mxu0 0.0
        %760 = vmatpush1.xpose.msra.mxu0 0.0
        %761 = vmatprep.subr.mxu0 0.0
        %762 = vmatpush1.xpose.msra.mxu0 0.0
        %763 = vmatprep.subr.mxu0 0.0
        %764 = vmatpush1.xpose.msra.mxu0 0.0
        %765 = vmatprep.subr.mxu0 0.0
        %766 = vmatpush1.xpose.msra.mxu0 0.0
        %767 = vmatprep.subr.mxu0 0.0
        %768 = vmatpush1.xpose.msra.mxu0 0.0
        %769 = vmatprep.subr.mxu0 0.0
        %770 = vmatpush1.xpose.msra.mxu0 0.0
        %771 = vmatprep.subr.mxu0 0.0
        %772 = vmatpush1.xpose.msra.mxu0 0.0
        %773 = vmatprep.subr.mxu0 0.0
        %774 = vmatpush1.xpose.msra.mxu0 0.0
        %775 = vmatprep.subr.mxu0 0.0
        %776 = vmatpush1.xpose.msra.mxu0 0.0
        %777 = vmatprep.subr.mxu0 0.0
        %778 = vmatpush1.xpose.msra.mxu0 0.0
        %779 = vmatprep.subr.mxu0 0.0
        %780 = vmatpush1.xpose.msra.mxu0 0.0
        %781 = vmatprep.subr.mxu0 0.0
        %782 = vmatpush1.xpose.msra.mxu0 0.0
        %783 = vmatprep.subr.mxu0 0.0
        %784 = vmatpush1.xpose.msra.mxu0 0.0
        %785 = vmatprep.subr.mxu0 0.0
        %786 = vmatpush1.xpose.msra.mxu0 0.0
        %787 = vmatprep.subr.mxu0 0.0
        %788 = vmatpush1.xpose.msra.mxu0 0.0
        %789 = vmatprep.subr.mxu0 0.0
        %790 = vmatpush1.xpose.msra.mxu0 0.0
        %791 = vmatprep.subr.mxu0 0.0
        %792 = vmatpush1.xpose.msra.mxu0 0.0
        %793 = vmatprep.subr.mxu0 0.0
        %794 = vmatpush1.xpose.msra.mxu0 0.0
        %795 = vmatprep.subr.mxu0 0.0
        %796 = vmatpush1.xpose.msra.mxu0 0.0
        %797 = vmatprep.subr.mxu0 0.0
        %798 = vmatpush1.xpose.msra.mxu0 0.0
        %799 = vmatprep.subr.mxu0 0.0
        %800 = vmatpush1.xpose.msra.mxu0 0.0
        %801 = vmatprep.mubr.f32.mxu0 0.0
        %802 = vmatmul.mubr.f32.gmra.mrb[0].mxu0 %v733
        %v803 = vpop.f32.mrb[0].mxu0
        %v804 = vadd.f32 0.0, %v803
        %v805 = vpop.f32.mrb[0].mxu0
        %806 = vdwg.mxu0
        %v807 = vmul.f32 %v804, 0.35355338
        %v808 = vsel %vm641, -1e+30, %v807
        %v809 = vsel %vm561, %v808, -inf
        %810 = vmax.xlane.f32.xlu0 %v809
        %v811 = vpop.xlane.xlu0 %810
        %v812 = vsub.f32 %v808, %v811
        %v813 = vmul.f32 %v812, 1.442695
        %v814 = vpow.pop %v813
        %v815 = vsel %vm561, %v814, 0.0
        %816 = vadd.xlane.f32.xlu0 %v815
        %v817 = vpop.xlane.xlu0 %816
        %v818 = vrcp.pop %v817
        %v819 = vmul.f32 %v814, %v818
        %v820 = vadd.f32 %v654, %v819
        %822 = vrot.lane.b32.xlu0 %v480, 120
        %v823 = vpop.permute.xlu0 %822
        %v826 = vsel %vm561, %v819, 0
        %828 = vmatprep.subr.mxu0 0.0
        %829 = vmatpush1.msra.mxu0 %v823
        %830 = vmatprep.subr.mxu0 0.0
        %831 = vmatpush1.msra.mxu0 0.0
        %832 = vmatprep.subr.mxu0 0.0
        %833 = vmatpush1.msra.mxu0 0.0
        %834 = vmatprep.subr.mxu0 0.0
        %835 = vmatpush1.msra.mxu0 0.0
        %836 = vmatprep.subr.mxu0 0.0
        %837 = vmatpush1.msra.mxu0 0.0
        %838 = vmatprep.subr.mxu0 0.0
        %839 = vmatpush1.msra.mxu0 0.0
        %840 = vmatprep.subr.mxu0 0.0
        %841 = vmatpush1.msra.mxu0 0.0
        %842 = vmatprep.subr.mxu0 0.0
        %843 = vmatpush1.msra.mxu0 0.0
        %844 = vmatprep.subr.mxu0 0.0
        %845 = vmatpush1.msra.mxu0 0.0
        %846 = vmatprep.subr.mxu0 0.0
        %847 = vmatpush1.msra.mxu0 0.0
        %848 = vmatprep.subr.mxu0 0.0
        %849 = vmatpush1.msra.mxu0 0.0
        %850 = vmatprep.subr.mxu0 0.0
        %851 = vmatpush1.msra.mxu0 0.0
        %852 = vmatprep.subr.mxu0 0.0
        %853 = vmatpush1.msra.mxu0 0.0
        %854 = vmatprep.subr.mxu0 0.0
        %855 = vmatpush1.msra.mxu0 0.0
        %856 = vmatprep.subr.mxu0 0.0
        %857 = vmatpush1.msra.mxu0 0.0
        %858 = vmatprep.subr.mxu0 0.0
        %859 = vmatpush1.msra.mxu0 0.0
        %860 = vmatprep.subr.mxu0 0.0
        %861 = vmatpush1.msra.mxu0 0.0
        %862 = vmatprep.subr.mxu0 0.0
        %863 = vmatpush1.msra.mxu0 0.0
        %864 = vmatprep.subr.mxu0 0.0
        %865 = vmatpush1.msra.mxu0 0.0
        %866 = vmatprep.subr.mxu0 0.0
        %867 = vmatpush1.msra.mxu0 0.0
        %868 = vmatprep.subr.mxu0 0.0
        %869 = vmatpush1.msra.mxu0 0.0
        %870 = vmatprep.subr.mxu0 0.0
        %871 = vmatpush1.msra.mxu0 0.0
        %872 = vmatprep.subr.mxu0 0.0
        %873 = vmatpush1.msra.mxu0 0.0
        %874 = vmatprep.subr.mxu0 0.0
        %875 = vmatpush1.msra.mxu0 0.0
        %876 = vmatprep.subr.mxu0 0.0
        %877 = vmatpush1.msra.mxu0 0.0
        %878 = vmatprep.subr.mxu0 0.0
        %879 = vmatpush1.msra.mxu0 0.0
        %880 = vmatprep.subr.mxu0 0.0
        %881 = vmatpush1.msra.mxu0 0.0
        %882 = vmatprep.subr.mxu0 0.0
        %883 = vmatpush1.msra.mxu0 0.0
        %884 = vmatprep.subr.mxu0 0.0
        %885 = vmatpush1.msra.mxu0 0.0
        %886 = vmatprep.subr.mxu0 0.0
        %887 = vmatpush1.msra.mxu0 0.0
        %888 = vmatprep.subr.mxu0 0.0
        %889 = vmatpush1.msra.mxu0 0.0
        %890 = vmatprep.subr.mxu0 0.0
        %891 = vmatpush1.msra.mxu0 0.0
        %892 = vmatprep.mubr.f32.mxu0 0.0
        %893 = vmatmul.mubr.f32.gmra.mrb[0].mxu0 %v826
        %v894 = vpop.f32.mrb[0].mxu0
        %v895 = vadd.f32 0.0, %v894
        %v896 = vpop.f32.mrb[0].mxu0
        %897 = vdwg.mxu0
        %v898 = vld [vmem:[#allocation10 + $0x8] sm:$0xff]
        %v900 = vsel %vm561, %v895, 0
        %902 = vmatprep.subr.mxu0 0.0
        %903 = vmatpush1.msra.mxu0 %v898
        %904 = vmatprep.subr.mxu0 0.0
        %905 = vmatpush1.msra.mxu0 0.0
        %906 = vmatprep.subr.mxu0 0.0
        %907 = vmatpush1.msra.mxu0 0.0
        %908 = vmatprep.subr.mxu0 0.0
        %909 = vmatpush1.msra.mxu0 0.0
        %910 = vmatprep.subr.mxu0 0.0
        %911 = vmatpush1.msra.mxu0 0.0
        %912 = vmatprep.subr.mxu0 0.0
        %913 = vmatpush1.msra.mxu0 0.0
        %914 = vmatprep.subr.mxu0 0.0
        %915 = vmatpush1.msra.mxu0 0.0
        %916 = vmatprep.subr.mxu0 0.0
        %917 = vmatpush1.msra.mxu0 0.0
        %918 = vmatprep.subr.mxu0 0.0
        %919 = vmatpush1.msra.mxu0 0.0
        %920 = vmatprep.subr.mxu0 0.0
        %921 = vmatpush1.msra.mxu0 0.0
        %922 = vmatprep.subr.mxu0 0.0
        %923 = vmatpush1.msra.mxu0 0.0
        %924 = vmatprep.subr.mxu0 0.0
        %925 = vmatpush1.msra.mxu0 0.0
        %926 = vmatprep.subr.mxu0 0.0
        %927 = vmatpush1.msra.mxu0 0.0
        %928 = vmatprep.subr.mxu0 0.0
        %929 = vmatpush1.msra.mxu0 0.0
        %930 = vmatprep.subr.mxu0 0.0
        %931 = vmatpush1.msra.mxu0 0.0
        %932 = vmatprep.subr.mxu0 0.0
        %933 = vmatpush1.msra.mxu0 0.0
        %934 = vmatprep.subr.mxu0 0.0
        %935 = vmatpush1.msra.mxu0 0.0
        %936 = vmatprep.subr.mxu0 0.0
        %937 = vmatpush1.msra.mxu0 0.0
        %938 = vmatprep.subr.mxu0 0.0
        %939 = vmatpush1.msra.mxu0 0.0
        %940 = vmatprep.subr.mxu0 0.0
        %941 = vmatpush1.msra.mxu0 0.0
        %942 = vmatprep.subr.mxu0 0.0
        %943 = vmatpush1.msra.mxu0 0.0
        %944 = vmatprep.subr.mxu0 0.0
        %945 = vmatpush1.msra.mxu0 0.0
        %946 = vmatprep.subr.mxu0 0.0
        %947 = vmatpush1.msra.mxu0 0.0
        %948 = vmatprep.subr.mxu0 0.0
        %949 = vmatpush1.msra.mxu0 0.0
        %950 = vmatprep.subr.mxu0 0.0
        %951 = vmatpush1.msra.mxu0 0.0
        %952 = vmatprep.subr.mxu0 0.0
        %953 = vmatpush1.msra.mxu0 0.0
        %954 = vmatprep.subr.mxu0 0.0
        %955 = vmatpush1.msra.mxu0 0.0
        %956 = vmatprep.subr.mxu0 0.0
        %957 = vmatpush1.msra.mxu0 0.0
        %958 = vmatprep.subr.mxu0 0.0
        %959 = vmatpush1.msra.mxu0 0.0
        %960 = vmatprep.subr.mxu0 0.0
        %961 = vmatpush1.msra.mxu0 0.0
        %962 = vmatprep.subr.mxu0 0.0
        %963 = vmatpush1.msra.mxu0 0.0
        %964 = vmatprep.subr.mxu0 0.0
        %965 = vmatpush1.msra.mxu0 0.0
        %966 = vmatprep.mubr.f32.mxu0 0.0
        %967 = vmatmul.mubr.f32.gmra.mrb[0].mxu0 %v900
        %v968 = vpop.f32.mrb[0].mxu0
        %v969 = vadd.f32 0.0, %v968
        %v970 = vpop.f32.mrb[0].mxu0
        %971 = vdwg.mxu0
        %v973 = vsel %vm561, %v725, 0
        %975 = vmatprep.subr.mxu0 0.0
        %976 = vmatpush1.msra.mxu0 %v728
        %977 = vmatprep.subr.mxu0 0.0
        %978 = vmatpush1.msra.mxu0 0.0
        %979 = vmatprep.subr.mxu0 0.0
        %980 = vmatpush1.msra.mxu0 0.0
        %981 = vmatprep.subr.mxu0 0.0
        %982 = vmatpush1.msra.mxu0 0.0
        %983 = vmatprep.subr.mxu0 0.0
        %984 = vmatpush1.msra.mxu0 0.0
        %985 = vmatprep.subr.mxu0 0.0
        %986 = vmatpush1.msra.mxu0 0.0
        %987 = vmatprep.subr.mxu0 0.0
        %988 = vmatpush1.msra.mxu0 0.0
        %989 = vmatprep.subr.mxu0 0.0
        %990 = vmatpush1.msra.mxu0 0.0
        %991 = vmatprep.subr.mxu0 0.0
        %992 = vmatpush1.msra.mxu0 0.0
        %993 = vmatprep.subr.mxu0 0.0
        %994 = vmatpush1.msra.mxu0 0.0
        %995 = vmatprep.subr.mxu0 0.0
        %996 = vmatpush1.msra.mxu0 0.0
        %997 = vmatprep.subr.mxu0 0.0
        %998 = vmatpush1.msra.mxu0 0.0
        %999 = vmatprep.subr.mxu0 0.0
        %1000 = vmatpush1.msra.mxu0 0.0
        %1001 = vmatprep.subr.mxu0 0.0
        %1002 = vmatpush1.msra.mxu0 0.0
        %1003 = vmatprep.subr.mxu0 0.0
        %1004 = vmatpush1.msra.mxu0 0.0
        %1005 = vmatprep.subr.mxu0 0.0
        %1006 = vmatpush1.msra.mxu0 0.0
        %1007 = vmatprep.subr.mxu0 0.0
        %1008 = vmatpush1.msra.mxu0 0.0
        %1009 = vmatprep.subr.mxu0 0.0
        %1010 = vmatpush1.msra.mxu0 0.0
        %1011 = vmatprep.subr.mxu0 0.0
        %1012 = vmatpush1.msra.mxu0 0.0
        %1013 = vmatprep.subr.mxu0 0.0
        %1014 = vmatpush1.msra.mxu0 0.0
        %1015 = vmatprep.subr.mxu0 0.0
        %1016 = vmatpush1.msra.mxu0 0.0
        %1017 = vmatprep.subr.mxu0 0.0
        %1018 = vmatpush1.msra.mxu0 0.0
        %1019 = vmatprep.subr.mxu0 0.0
        %1020 = vmatpush1.msra.mxu0 0.0
        %1021 = vmatprep.subr.mxu0 0.0
        %1022 = vmatpush1.msra.mxu0 0.0
        %1023 = vmatprep.subr.mxu0 0.0
        %1024 = vmatpush1.msra.mxu0 0.0
        %1025 = vmatprep.subr.mxu0 0.0
        %1026 = vmatpush1.msra.mxu0 0.0
        %1027 = vmatprep.subr.mxu0 0.0
        %1028 = vmatpush1.msra.mxu0 0.0
        %1029 = vmatprep.subr.mxu0 0.0
        %1030 = vmatpush1.msra.mxu0 0.0
        %1031 = vmatprep.subr.mxu0 0.0
        %1032 = vmatpush1.msra.mxu0 0.0
        %1033 = vmatprep.subr.mxu0 0.0
        %1034 = vmatpush1.msra.mxu0 0.0
        %1035 = vmatprep.subr.mxu0 0.0
        %1036 = vmatpush1.msra.mxu0 0.0
        %1037 = vmatprep.subr.mxu0 0.0
        %1038 = vmatpush1.msra.mxu0 0.0
        %1039 = vmatprep.mubr.f32.mxu0 0.0
        %1040 = vmatmul.mubr.f32.gmra.mrb[0].mxu0 %v973
        %v1041 = vpop.f32.mrb[0].mxu0
        %v1042 = vadd.f32 %v969, %v1041
        %v1043 = vpop.f32.mrb[0].mxu0
        %1044 = vdwg.mxu0
        %1045 = vrot.lane.b32.xlu0 %v558, 112
        %v1046 = vpop.permute.xlu0 %1045
        %1047 = vrot.lane.b32.xlu0 %v479, 112
        %v1048 = vpop.permute.xlu0 %1047
        %v1049 = vsel %vm561, %v1046, 0
        %v1051 = vsel %vm561, %v1048, 0
        %1053 = vmatprep.subr.mxu0 0.0
        %1054 = vmatpush1.xpose.msra.mxu0 %v1051
        %1055 = vmatprep.subr.mxu0 0.0
        %1056 = vmatpush1.xpose.msra.mxu0 0.0
        %1057 = vmatprep.subr.mxu0 0.0
        %1058 = vmatpush1.xpose.msra.mxu0 0.0
        %1059 = vmatprep.subr.mxu0 0.0
        %1060 = vmatpush1.xpose.msra.mxu0 0.0
        %1061 = vmatprep.subr.mxu0 0.0
        %1062 = vmatpush1.xpose.msra.mxu0 0.0
        %1063 = vmatprep.subr.mxu0 0.0
        %1064 = vmatpush1.xpose.msra.mxu0 0.0
        %1065 = vmatprep.subr.mxu0 0.0
        %1066 = vmatpush1.xpose.msra.mxu0 0.0
        %1067 = vmatprep.subr.mxu0 0.0
        %1068 = vmatpush1.xpose.msra.mxu0 0.0
        %1069 = vmatprep.subr.mxu0 0.0
        %1070 = vmatpush1.xpose.msra.mxu0 0.0
        %1071 = vmatprep.subr.mxu0 0.0
        %1072 = vmatpush1.xpose.msra.mxu0 0.0
        %1073 = vmatprep.subr.mxu0 0.0
        %1074 = vmatpush1.xpose.msra.mxu0 0.0
        %1075 = vmatprep.subr.mxu0 0.0
        %1076 = vmatpush1.xpose.msra.mxu0 0.0
        %1077 = vmatprep.subr.mxu0 0.0
        %1078 = vmatpush1.xpose.msra.mxu0 0.0
        %1079 = vmatprep.subr.mxu0 0.0
        %1080 = vmatpush1.xpose.msra.mxu0 0.0
        %1081 = vmatprep.subr.mxu0 0.0
        %1082 = vmatpush1.xpose.msra.mxu0 0.0
        %1083 = vmatprep.subr.mxu0 0.0
        %1084 = vmatpush1.xpose.msra.mxu0 0.0
        %1085 = vmatprep.subr.mxu0 0.0
        %1086 = vmatpush1.xpose.msra.mxu0 0.0
        %1087 = vmatprep.subr.mxu0 0.0
        %1088 = vmatpush1.xpose.msra.mxu0 0.0
        %1089 = vmatprep.subr.mxu0 0.0
        %1090 = vmatpush1.xpose.msra.mxu0 0.0
        %1091 = vmatprep.subr.mxu0 0.0
        %1092 = vmatpush1.xpose.msra.mxu0 0.0
        %1093 = vmatprep.subr.mxu0 0.0
        %1094 = vmatpush1.xpose.msra.mxu0 0.0
        %1095 = vmatprep.subr.mxu0 0.0
        %1096 = vmatpush1.xpose.msra.mxu0 0.0
        %1097 = vmatprep.subr.mxu0 0.0
        %1098 = vmatpush1.xpose.msra.mxu0 0.0
        %1099 = vmatprep.subr.mxu0 0.0
        %1100 = vmatpush1.xpose.msra.mxu0 0.0
        %1101 = vmatprep.subr.mxu0 0.0
        %1102 = vmatpush1.xpose.msra.mxu0 0.0
        %1103 = vmatprep.subr.mxu0 0.0
        %1104 = vmatpush1.xpose.msra.mxu0 0.0
        %1105 = vmatprep.subr.mxu0 0.0
        %1106 = vmatpush1.xpose.msra.mxu0 0.0
        %1107 = vmatprep.subr.mxu0 0.0
        %1108 = vmatpush1.xpose.msra.mxu0 0.0
        %1109 = vmatprep.subr.mxu0 0.0
        %1110 = vmatpush1.xpose.msra.mxu0 0.0
        %1111 = vmatprep.subr.mxu0 0.0
        %1112 = vmatpush1.xpose.msra.mxu0 0.0
        %1113 = vmatprep.subr.mxu0 0.0
        %1114 = vmatpush1.xpose.msra.mxu0 0.0
        %1115 = vmatprep.subr.mxu0 0.0
        %1116 = vmatpush1.xpose.msra.mxu0 0.0
        %1117 = vmatprep.mubr.f32.mxu0 0.0
        %1118 = vmatmul.mubr.f32.gmra.mrb[0].mxu0 %v1049
        %v1119 = vpop.f32.mrb[0].mxu0
        %v1120 = vadd.f32 0.0, %v1119
        %v1121 = vpop.f32.mrb[0].mxu0
        %1122 = vdwg.mxu0
        %v1123 = vmul.f32 %v1120, 0.35355338
        %v1124 = vsel %vm641, -1e+30, %v1123
        %v1125 = vsel %vm561, %v1124, -inf
        %1126 = vmax.xlane.f32.xlu0 %v1125
        %v1127 = vpop.xlane.xlu0 %1126
        %v1128 = vsub.f32 %v1124, %v1127
        %v1129 = vmul.f32 %v1128, 1.442695
        %v1130 = vpow.pop %v1129
        %v1131 = vsel %vm561, %v1130, 0.0
        %1132 = vadd.xlane.f32.xlu0 %v1131
        %v1133 = vpop.xlane.xlu0 %1132
        %v1134 = vrcp.pop %v1133
        %v1135 = vmul.f32 %v1130, %v1134
        %v1136 = vadd.f32 %v820, %v1135
        %1137 = vrot.lane.b32.xlu0 %v480, 112
        %v1138 = vpop.permute.xlu0 %1137
        %v1141 = vsel %vm561, %v1135, 0
        %1143 = vmatprep.subr.mxu0 0.0
        %1144 = vmatpush1.msra.mxu0 %v1138
        %1145 = vmatprep.subr.mxu0 0.0
        %1146 = vmatpush1.msra.mxu0 0.0
        %1147 = vmatprep.subr.mxu0 0.0
        %1148 = vmatpush1.msra.mxu0 0.0
        %1149 = vmatprep.subr.mxu0 0.0
        %1150 = vmatpush1.msra.mxu0 0.0
        %1151 = vmatprep.subr.mxu0 0.0
        %1152 = vmatpush1.msra.mxu0 0.0
        %1153 = vmatprep.subr.mxu0 0.0
        %1154 = vmatpush1.msra.mxu0 0.0
        %1155 = vmatprep.subr.mxu0 0.0
        %1156 = vmatpush1.msra.mxu0 0.0
        %1157 = vmatprep.subr.mxu0 0.0
        %1158 = vmatpush1.msra.mxu0 0.0
        %1159 = vmatprep.subr.mxu0 0.0
        %1160 = vmatpush1.msra.mxu0 0.0
        %1161 = vmatprep.subr.mxu0 0.0
        %1162 = vmatpush1.msra.mxu0 0.0
        %1163 = vmatprep.subr.mxu0 0.0
        %1164 = vmatpush1.msra.mxu0 0.0
        %1165 = vmatprep.subr.mxu0 0.0
        %1166 = vmatpush1.msra.mxu0 0.0
        %1167 = vmatprep.subr.mxu0 0.0
        %1168 = vmatpush1.msra.mxu0 0.0
        %1169 = vmatprep.subr.mxu0 0.0
        %1170 = vmatpush1.msra.mxu0 0.0
        %1171 = vmatprep.subr.mxu0 0.0
        %1172 = vmatpush1.msra.mxu0 0.0
        %1173 = vmatprep.subr.mxu0 0.0
        %1174 = vmatpush1.msra.mxu0 0.0
        %1175 = vmatprep.subr.mxu0 0.0
        %1176 = vmatpush1.msra.mxu0 0.0
        %1177 = vmatprep.subr.mxu0 0.0
        %1178 = vmatpush1.msra.mxu0 0.0
        %1179 = vmatprep.subr.mxu0 0.0
        %1180 = vmatpush1.msra.mxu0 0.0
        %1181 = vmatprep.subr.mxu0 0.0
        %1182 = vmatpush1.msra.mxu0 0.0
        %1183 = vmatprep.subr.mxu0 0.0
        %1184 = vmatpush1.msra.mxu0 0.0
        %1185 = vmatprep.subr.mxu0 0.0
        %1186 = vmatpush1.msra.mxu0 0.0
        %1187 = vmatprep.subr.mxu0 0.0
        %1188 = vmatpush1.msra.mxu0 0.0
        %1189 = vmatprep.subr.mxu0 0.0
        %1190 = vmatpush1.msra.mxu0 0.0
        %1191 = vmatprep.subr.mxu0 0.0
        %1192 = vmatpush1.msra.mxu0 0.0
        %1193 = vmatprep.subr.mxu0 0.0
        %1194 = vmatpush1.msra.mxu0 0.0
        %1195 = vmatprep.subr.mxu0 0.0
        %1196 = vmatpush1.msra.mxu0 0.0
        %1197 = vmatprep.subr.mxu0 0.0
        %1198 = vmatpush1.msra.mxu0 0.0
        %1199 = vmatprep.subr.mxu0 0.0
        %1200 = vmatpush1.msra.mxu0 0.0
        %1201 = vmatprep.subr.mxu0 0.0
        %1202 = vmatpush1.msra.mxu0 0.0
        %1203 = vmatprep.subr.mxu0 0.0
        %1204 = vmatpush1.msra.mxu0 0.0
        %1205 = vmatprep.subr.mxu0 0.0
        %1206 = vmatpush1.msra.mxu0 0.0
        %1207 = vmatprep.mubr.f32.mxu0 0.0
        %1208 = vmatmul.mubr.f32.gmra.mrb[0].mxu0 %v1141
        %v1209 = vpop.f32.mrb[0].mxu0
        %v1210 = vadd.f32 0.0, %v1209
        %v1211 = vpop.f32.mrb[0].mxu0
        %1212 = vdwg.mxu0
        %v1213 = vld [vmem:[#allocation10 + $0x10] sm:$0xff]
        %v1215 = vsel %vm561, %v1210, 0
        %1217 = vmatprep.subr.mxu0 0.0
        %1218 = vmatpush1.msra.mxu0 %v1213
        %1219 = vmatprep.subr.mxu0 0.0
        %1220 = vmatpush1.msra.mxu0 0.0
        %1221 = vmatprep.subr.mxu0 0.0
        %1222 = vmatpush1.msra.mxu0 0.0
        %1223 = vmatprep.subr.mxu0 0.0
        %1224 = vmatpush1.msra.mxu0 0.0
        %1225 = vmatprep.subr.mxu0 0.0
        %1226 = vmatpush1.msra.mxu0 0.0
        %1227 = vmatprep.subr.mxu0 0.0
        %1228 = vmatpush1.msra.mxu0 0.0
        %1229 = vmatprep.subr.mxu0 0.0
        %1230 = vmatpush1.msra.mxu0 0.0
        %1231 = vmatprep.subr.mxu0 0.0
        %1232 = vmatpush1.msra.mxu0 0.0
        %1233 = vmatprep.subr.mxu0 0.0
        %1234 = vmatpush1.msra.mxu0 0.0
        %1235 = vmatprep.subr.mxu0 0.0
        %1236 = vmatpush1.msra.mxu0 0.0
        %1237 = vmatprep.subr.mxu0 0.0
        %1238 = vmatpush1.msra.mxu0 0.0
        %1239 = vmatprep.subr.mxu0 0.0
        %1240 = vmatpush1.msra.mxu0 0.0
        %1241 = vmatprep.subr.mxu0 0.0
        %1242 = vmatpush1.msra.mxu0 0.0
        %1243 = vmatprep.subr.mxu0 0.0
        %1244 = vmatpush1.msra.mxu0 0.0
        %1245 = vmatprep.subr.mxu0 0.0
        %1246 = vmatpush1.msra.mxu0 0.0
        %1247 = vmatprep.subr.mxu0 0.0
        %1248 = vmatpush1.msra.mxu0 0.0
        %1249 = vmatprep.subr.mxu0 0.0
        %1250 = vmatpush1.msra.mxu0 0.0
        %1251 = vmatprep.subr.mxu0 0.0
        %1252 = vmatpush1.msra.mxu0 0.0
        %1253 = vmatprep.subr.mxu0 0.0
        %1254 = vmatpush1.msra.mxu0 0.0
        %1255 = vmatprep.subr.mxu0 0.0
        %1256 = vmatpush1.msra.mxu0 0.0
        %1257 = vmatprep.subr.mxu0 0.0
        %1258 = vmatpush1.msra.mxu0 0.0
        %1259 = vmatprep.subr.mxu0 0.0
        %1260 = vmatpush1.msra.mxu0 0.0
        %1261 = vmatprep.subr.mxu0 0.0
        %1262 = vmatpush1.msra.mxu0 0.0
        %1263 = vmatprep.subr.mxu0 0.0
        %1264 = vmatpush1.msra.mxu0 0.0
        %1265 = vmatprep.subr.mxu0 0.0
        %1266 = vmatpush1.msra.mxu0 0.0
        %1267 = vmatprep.subr.mxu0 0.0
        %1268 = vmatpush1.msra.mxu0 0.0
        %1269 = vmatprep.subr.mxu0 0.0
        %1270 = vmatpush1.msra.mxu0 0.0
        %1271 = vmatprep.subr.mxu0 0.0
        %1272 = vmatpush1.msra.mxu0 0.0
        %1273 = vmatprep.subr.mxu0 0.0
        %1274 = vmatpush1.msra.mxu0 0.0
        %1275 = vmatprep.subr.mxu0 0.0
        %1276 = vmatpush1.msra.mxu0 0.0
        %1277 = vmatprep.subr.mxu0 0.0
        %1278 = vmatpush1.msra.mxu0 0.0
        %1279 = vmatprep.subr.mxu0 0.0
        %1280 = vmatpush1.msra.mxu0 0.0
        %1281 = vmatprep.mubr.f32.mxu0 0.0
        %1282 = vmatmul.mubr.f32.gmra.mrb[0].mxu0 %v1215
        %v1283 = vpop.f32.mrb[0].mxu0
        %v1284 = vadd.f32 0.0, %v1283
        %v1285 = vpop.f32.mrb[0].mxu0
        %1286 = vdwg.mxu0
        %v1287 = vadd.f32 %v1042, %v1284
        %1288 = vrot.lane.b32.xlu0 %v558, 104
        %v1289 = vpop.permute.xlu0 %1288
        %1290 = vrot.lane.b32.xlu0 %v479, 104
        %v1291 = vpop.permute.xlu0 %1290
        %v1292 = vsel %vm561, %v1289, 0
        %v1294 = vsel %vm561, %v1291, 0
        %1296 = vmatprep.subr.mxu0 0.0
        %1297 = vmatpush1.xpose.msra.mxu0 %v1294
        %1298 = vmatprep.subr.mxu0 0.0
        %1299 = vmatpush1.xpose.msra.mxu0 0.0
        %1300 = vmatprep.subr.mxu0 0.0
        %1301 = vmatpush1.xpose.msra.mxu0 0.0
        %1302 = vmatprep.subr.mxu0 0.0
        %1303 = vmatpush1.xpose.msra.mxu0 0.0
        %1304 = vmatprep.subr.mxu0 0.0
        %1305 = vmatpush1.xpose.msra.mxu0 0.0
        %1306 = vmatprep.subr.mxu0 0.0
        %1307 = vmatpush1.xpose.msra.mxu0 0.0
        %1308 = vmatprep.subr.mxu0 0.0
        %1309 = vmatpush1.xpose.msra.mxu0 0.0
        %1310 = vmatprep.subr.mxu0 0.0
        %1311 = vmatpush1.xpose.msra.mxu0 0.0
        %1312 = vmatprep.subr.mxu0 0.0
        %1313 = vmatpush1.xpose.msra.mxu0 0.0
        %1314 = vmatprep.subr.mxu0 0.0
        %1315 = vmatpush1.xpose.msra.mxu0 0.0
        %1316 = vmatprep.subr.mxu0 0.0
        %1317 = vmatpush1.xpose.msra.mxu0 0.0
        %1318 = vmatprep.subr.mxu0 0.0
        %1319 = vmatpush1.xpose.msra.mxu0 0.0
        %1320 = vmatprep.subr.mxu0 0.0
        %1321 = vmatpush1.xpose.msra.mxu0 0.0
        %1322 = vmatprep.subr.mxu0 0.0
        %1323 = vmatpush1.xpose.msra.mxu0 0.0
        %1324 = vmatprep.subr.mxu0 0.0
        %1325 = vmatpush1.xpose.msra.mxu0 0.0
        %1326 = vmatprep.subr.mxu0 0.0
        %1327 = vmatpush1.xpose.msra.mxu0 0.0
        %1328 = vmatprep.subr.mxu0 0.0
        %1329 = vmatpush1.xpose.msra.mxu0 0.0
        %1330 = vmatprep.subr.mxu0 0.0
        %1331 = vmatpush1.xpose.msra.mxu0 0.0
        %1332 = vmatprep.subr.mxu0 0.0
        %1333 = vmatpush1.xpose.msra.mxu0 0.0
        %1334 = vmatprep.subr.mxu0 0.0
        %1335 = vmatpush1.xpose.msra.mxu0 0.0
        %1336 = vmatprep.subr.mxu0 0.0
        %1337 = vmatpush1.xpose.msra.mxu0 0.0
        %1338 = vmatprep.subr.mxu0 0.0
        %1339 = vmatpush1.xpose.msra.mxu0 0.0
        %1340 = vmatprep.subr.mxu0 0.0
        %1341 = vmatpush1.xpose.msra.mxu0 0.0
        %1342 = vmatprep.subr.mxu0 0.0
        %1343 = vmatpush1.xpose.msra.mxu0 0.0
        %1344 = vmatprep.subr.mxu0 0.0
        %1345 = vmatpush1.xpose.msra.mxu0 0.0
        %1346 = vmatprep.subr.mxu0 0.0
        %1347 = vmatpush1.xpose.msra.mxu0 0.0
        %1348 = vmatprep.subr.mxu0 0.0
        %1349 = vmatpush1.xpose.msra.mxu0 0.0
        %1350 = vmatprep.subr.mxu0 0.0
        %1351 = vmatpush1.xpose.msra.mxu0 0.0
        %1352 = vmatprep.subr.mxu0 0.0
        %1353 = vmatpush1.xpose.msra.mxu0 0.0
        %1354 = vmatprep.subr.mxu0 0.0
        %1355 = vmatpush1.xpose.msra.mxu0 0.0
        %1356 = vmatprep.subr.mxu0 0.0
        %1357 = vmatpush1.xpose.msra.mxu0 0.0
        %1358 = vmatprep.subr.mxu0 0.0
        %1359 = vmatpush1.xpose.msra.mxu0 0.0
        %1360 = vmatprep.mubr.f32.mxu0 0.0
        %1361 = vmatmul.mubr.f32.gmra.mrb[0].mxu0 %v1292
        %v1362 = vpop.f32.mrb[0].mxu0
        %v1363 = vadd.f32 0.0, %v1362
        %v1364 = vpop.f32.mrb[0].mxu0
        %1365 = vdwg.mxu0
        %v1366 = vmul.f32 %v1363, 0.35355338
        %v1367 = vsel %vm641, -1e+30, %v1366
        %v1368 = vsel %vm561, %v1367, -inf
        %1369 = vmax.xlane.f32.xlu0 %v1368
        %v1370 = vpop.xlane.xlu0 %1369
        %v1371 = vsub.f32 %v1367, %v1370
        %v1372 = vmul.f32 %v1371, 1.442695
        %v1373 = vpow.pop %v1372
        %v1374 = vsel %vm561, %v1373, 0.0
        %1375 = vadd.xlane.f32.xlu0 %v1374
        %v1376 = vpop.xlane.xlu0 %1375
        %v1377 = vrcp.pop %v1376
        %v1378 = vmul.f32 %v1373, %v1377
        %v1379 = vadd.f32 %v1136, %v1378
        %1380 = vrot.lane.b32.xlu0 %v480, 104
        %v1381 = vpop.permute.xlu0 %1380
        %v1384 = vsel %vm561, %v1378, 0
        %1386 = vmatprep.subr.mxu0 0.0
        %1387 = vmatpush1.msra.mxu0 %v1381
        %1388 = vmatprep.subr.mxu0 0.0
        %1389 = vmatpush1.msra.mxu0 0.0
        %1390 = vmatprep.subr.mxu0 0.0
        %1391 = vmatpush1.msra.mxu0 0.0
        %1392 = vmatprep.subr.mxu0 0.0
        %1393 = vmatpush1.msra.mxu0 0.0
        %1394 = vmatprep.subr.mxu0 0.0
        %1395 = vmatpush1.msra.mxu0 0.0
        %1396 = vmatprep.subr.mxu0 0.0
        %1397 = vmatpush1.msra.mxu0 0.0
        %1398 = vmatprep.subr.mxu0 0.0
        %1399 = vmatpush1.msra.mxu0 0.0
        %1400 = vmatprep.subr.mxu0 0.0
        %1401 = vmatpush1.msra.mxu0 0.0
        %1402 = vmatprep.subr.mxu0 0.0
        %1403 = vmatpush1.msra.mxu0 0.0
        %1404 = vmatprep.subr.mxu0 0.0
        %1405 = vmatpush1.msra.mxu0 0.0
        %1406 = vmatprep.subr.mxu0 0.0
        %1407 = vmatpush1.msra.mxu0 0.0
        %1408 = vmatprep.subr.mxu0 0.0
        %1409 = vmatpush1.msra.mxu0 0.0
        %1410 = vmatprep.subr.mxu0 0.0
        %1411 = vmatpush1.msra.mxu0 0.0
        %1412 = vmatprep.subr.mxu0 0.0
        %1413 = vmatpush1.msra.mxu0 0.0
        %1414 = vmatprep.subr.mxu0 0.0
        %1415 = vmatpush1.msra.mxu0 0.0
        %1416 = vmatprep.subr.mxu0 0.0
        %1417 = vmatpush1.msra.mxu0 0.0
        %1418 = vmatprep.subr.mxu0 0.0
        %1419 = vmatpush1.msra.mxu0 0.0
        %1420 = vmatprep.subr.mxu0 0.0
        %1421 = vmatpush1.msra.mxu0 0.0
        %1422 = vmatprep.subr.mxu0 0.0
        %1423 = vmatpush1.msra.mxu0 0.0
        %1424 = vmatprep.subr.mxu0 0.0
        %1425 = vmatpush1.msra.mxu0 0.0
        %1426 = vmatprep.subr.mxu0 0.0
        %1427 = vmatpush1.msra.mxu0 0.0
        %1428 = vmatprep.subr.mxu0 0.0
        %1429 = vmatpush1.msra.mxu0 0.0
        %1430 = vmatprep.subr.mxu0 0.0
        %1431 = vmatpush1.msra.mxu0 0.0
        %1432 = vmatprep.subr.mxu0 0.0
        %1433 = vmatpush1.msra.mxu0 0.0
        %1434 = vmatprep.subr.mxu0 0.0
        %1435 = vmatpush1.msra.mxu0 0.0
        %1436 = vmatprep.subr.mxu0 0.0
        %1437 = vmatpush1.msra.mxu0 0.0
        %1438 = vmatprep.subr.mxu0 0.0
        %1439 = vmatpush1.msra.mxu0 0.0
        %1440 = vmatprep.subr.mxu0 0.0
        %1441 = vmatpush1.msra.mxu0 0.0
        %1442 = vmatprep.subr.mxu0 0.0
        %1443 = vmatpush1.msra.mxu0 0.0
        %1444 = vmatprep.subr.mxu0 0.0
        %1445 = vmatpush1.msra.mxu0 0.0
        %1446 = vmatprep.subr.mxu0 0.0
        %1447 = vmatpush1.msra.mxu0 0.0
        %1448 = vmatprep.subr.mxu0 0.0
        %1449 = vmatpush1.msra.mxu0 0.0
        %1450 = vmatprep.mubr.f32.mxu0 0.0
        %1451 = vmatmul.mubr.f32.gmra.mrb[0].mxu0 %v1384
        %v1452 = vpop.f32.mrb[0].mxu0
        %v1453 = vadd.f32 0.0, %v1452
        %v1454 = vpop.f32.mrb[0].mxu0
        %1455 = vdwg.mxu0
        %v1456 = vld [vmem:[#allocation10 + $0x18] sm:$0xff]
        %v1458 = vsel %vm561, %v1453, 0
        %1460 = vmatprep.subr.mxu0 0.0
        %1461 = vmatpush1.msra.mxu0 %v1456
        %1462 = vmatprep.subr.mxu0 0.0
        %1463 = vmatpush1.msra.mxu0 0.0
        %1464 = vmatprep.subr.mxu0 0.0
        %1465 = vmatpush1.msra.mxu0 0.0
        %1466 = vmatprep.subr.mxu0 0.0
        %1467 = vmatpush1.msra.mxu0 0.0
        %1468 = vmatprep.subr.mxu0 0.0
        %1469 = vmatpush1.msra.mxu0 0.0
        %1470 = vmatprep.subr.mxu0 0.0
        %1471 = vmatpush1.msra.mxu0 0.0
        %1472 = vmatprep.subr.mxu0 0.0
        %1473 = vmatpush1.msra.mxu0 0.0
        %1474 = vmatprep.subr.mxu0 0.0
        %1475 = vmatpush1.msra.mxu0 0.0
        %1476 = vmatprep.subr.mxu0 0.0
        %1477 = vmatpush1.msra.mxu0 0.0
        %1478 = vmatprep.subr.mxu0 0.0
        %1479 = vmatpush1.msra.mxu0 0.0
        %1480 = vmatprep.subr.mxu0 0.0
        %1481 = vmatpush1.msra.mxu0 0.0
        %1482 = vmatprep.subr.mxu0 0.0
        %1483 = vmatpush1.msra.mxu0 0.0
        %1484 = vmatprep.subr.mxu0 0.0
        %1485 = vmatpush1.msra.mxu0 0.0
        %1486 = vmatprep.subr.mxu0 0.0
        %1487 = vmatpush1.msra.mxu0 0.0
        %1488 = vmatprep.subr.mxu0 0.0
        %1489 = vmatpush1.msra.mxu0 0.0
        %1490 = vmatprep.subr.mxu0 0.0
        %1491 = vmatpush1.msra.mxu0 0.0
        %1492 = vmatprep.subr.mxu0 0.0
        %1493 = vmatpush1.msra.mxu0 0.0
        %1494 = vmatprep.subr.mxu0 0.0
        %1495 = vmatpush1.msra.mxu0 0.0
        %1496 = vmatprep.subr.mxu0 0.0
        %1497 = vmatpush1.msra.mxu0 0.0
        %1498 = vmatprep.subr.mxu0 0.0
        %1499 = vmatpush1.msra.mxu0 0.0
        %1500 = vmatprep.subr.mxu0 0.0
        %1501 = vmatpush1.msra.mxu0 0.0
        %1502 = vmatprep.subr.mxu0 0.0
        %1503 = vmatpush1.msra.mxu0 0.0
        %1504 = vmatprep.subr.mxu0 0.0
        %1505 = vmatpush1.msra.mxu0 0.0
        %1506 = vmatprep.subr.mxu0 0.0
        %1507 = vmatpush1.msra.mxu0 0.0
        %1508 = vmatprep.subr.mxu0 0.0
        %1509 = vmatpush1.msra.mxu0 0.0
        %1510 = vmatprep.subr.mxu0 0.0
        %1511 = vmatpush1.msra.mxu0 0.0
        %1512 = vmatprep.subr.mxu0 0.0
        %1513 = vmatpush1.msra.mxu0 0.0
        %1514 = vmatprep.subr.mxu0 0.0
        %1515 = vmatpush1.msra.mxu0 0.0
        %1516 = vmatprep.subr.mxu0 0.0
        %1517 = vmatpush1.msra.mxu0 0.0
        %1518 = vmatprep.subr.mxu0 0.0
        %1519 = vmatpush1.msra.mxu0 0.0
        %1520 = vmatprep.subr.mxu0 0.0
        %1521 = vmatpush1.msra.mxu0 0.0
        %1522 = vmatprep.subr.mxu0 0.0
        %1523 = vmatpush1.msra.mxu0 0.0
        %1524 = vmatprep.mubr.f32.mxu0 0.0
        %1525 = vmatmul.mubr.f32.gmra.mrb[0].mxu0 %v1458
        %v1526 = vpop.f32.mrb[0].mxu0
        %v1527 = vadd.f32 0.0, %v1526
        %v1528 = vpop.f32.mrb[0].mxu0
        %1529 = vdwg.mxu0
        %v1530 = vadd.f32 %v1287, %v1527
        %v1531 = vmul.f32 %v1379, 0.25
        %1532 = vst.msk [vmem:[%s471] sm:$0xff] %vm561, %v1531
        %v1533 = vadd.f32 %v1530, %v478
        %v1534 = vsel %vm487, %v1533, 0.0
        %1535 = vadd.xlane.f32.xlu0 %v1534
        %v1536 = vpop.xlane.xlu0 %1535
        %v1537 = vrcp.pop 32.0
        %v1538 = vmul.f32 %v1536, %v1537
        %v1539 = vsub.f32 %v1533, %v1538
        %v1540 = vmul.f32 %v1539, %v1539
        %v1541 = vsel %vm487, %v1540, 0.0
        %1542 = vadd.xlane.f32.xlu0 %v1541
        %v1543 = vpop.xlane.xlu0 %1542
        %v1544 = vmul.f32 %v1543, 0.032258064
        %v1545 = vrsqrt.pop %v1544
        %v1546 = vmul.f32 %v1544, %v1545
        %vm1547 = vcmp.eq.f32.partialorder %v1544, inf
        %v1548 = vsel %vm1547, %v1544, %v1546
        %vm1549 = vcmp.eq.f32.partialorder %v1544, 0.0
        %v1550 = vand.u32 %v1544, 2147483648
        %v1551 = vsel %vm1549, %v1550, %v1548
        %v1552 = vld [vmem:[%s6] sm:$0x1]
        %v1554 = vlaneseq
        %v1555 = vshrl.u32 %v1554, 7
        %v1556 = vsub.s32 0, %v1555
        %v1557 = vrot.slane %v1552, %v1556
        %v1559 = vmul.f32 %v1557, %v1539
        %v1560 = vadd.f32 %v1551, 1e-06
        %v1561 = vrcp.pop %v1560
        %v1562 = vmul.f32 %v1559, %v1561
        %v1563 = vld [vmem:[%s7] sm:$0x1]
        %v1565 = vlaneseq
        %v1566 = vshrl.u32 %v1565, 7
        %v1567 = vsub.s32 0, %v1566
        %v1568 = vrot.slane %v1563, %v1567
        %v1570 = vadd.f32 %v1562, %v1568
        %1571 = vst.msk [vmem:[%s464] sm:$0xff] %vm487, %v1570
        %s1572 = sand.u32 %s230, 1
        %s1573 = scalar_lea.sflag [#allocation4], %s1572
        %s1574 = sand.u32 %s230, 1
        %s1575 = smul.addr %s1574, 8
        %s1576 = scalar_lea.vmem [#allocation11], %s1575
        %s1577 = sand.u32 %s256, 1
        %s1578 = scalar_lea.sflag [#allocation13], %s1577
        %s1579 = sand.u32 %s256, 1
        %s1580 = smul.addr %s1579, 8
        %s1581 = scalar_lea.vmem [#allocation12], %s1580
        // Predicated region
        $region73: #{tpu_custom_call.1} parent=51 // pred_check
          %p1582 = pneg %p240
        $region74: #{tpu_custom_call.1} parent=51 // pred_check_branch
          %1584 = sbr.rel (%p1582) target = $region76
        $region75: #{tpu_custom_call.1} parent=51 // pred_region
          %s1586 = ssub.s32 128, 128
          %1587 = vsyncadd %s1573, %s1586
          %s1588 = smul.addr %s34, 128
          %s1589 = scalar_lea.hbm %s8, %s1588
          %s1591 = sshll.u32 %s1576, 4
          %s1592 = int_to_ptr.vmem [resolvable:$true] %s1591
          %1594 = dma.vmem_to_hbm [thread:$0]  %s1592, 128, %s1589, %s1573
        $region76: #{tpu_custom_call.1} parent=51 // pred_fallthru
          _
        // Predicated region
        $region77: #{tpu_custom_call.1} parent=51 // pred_check
          %p1595 = pneg %p266
        $region78: #{tpu_custom_call.1} parent=51 // pred_check_branch
          %1597 = sbr.rel (%p1595) target = $region80
        $region79: #{tpu_custom_call.1} parent=51 // pred_region
          %s1599 = ssub.s32 128, 128
          %1600 = vsyncadd %s1578, %s1599
          %s1601 = smul.addr %s34, 128
          %s1602 = scalar_lea.hbm %s9, %s1601
          %s1604 = sshll.u32 %s1581, 4
          %s1605 = int_to_ptr.vmem [resolvable:$true] %s1604
          %1607 = dma.vmem_to_hbm [thread:$0]  %s1605, 128, %s1602, %s1578
        $region80: #{tpu_custom_call.1} parent=51 // pred_fallthru
          _
      $region52: #{tpu_custom_call.1} parent=5 // pred_fallthru
        _
      %p1608 = scmp.le.s32.totalorder 2, %s29
      // Predicated region
      $region81: #{tpu_custom_call.1} parent=5 // pred_check
        %p1609 = pneg %p1608
      $region82: #{tpu_custom_call.1} parent=5 // pred_check_branch
        %1611 = sbr.rel (%p1609) target = $region84
      $region83: #{tpu_custom_call.1} parent=5 // pred_region
        %s1612 = ssub.s32 %s29, 2
        // Predicated region
        $region85: #{tpu_custom_call.1} parent=83 // pred_check
          %p1613 = pneg %p246
        $region86: #{tpu_custom_call.1} parent=83 // pred_check_branch
          %1615 = sbr.rel (%p1613) target = $region88
        $region87: #{tpu_custom_call.1} parent=83 // pred_region
          %s1616 = sand.u32 %s231, 1
          %s1617 = scalar_lea.sflag [#allocation4], %s1616
          %s1618 = sand.u32 %s231, 1
          %s1619 = smul.addr %s1618, 8
          %s1620 = scalar_lea.vmem [#allocation11], %s1619
          %1621 = dma.done %s1617, 128
        $region88: #{tpu_custom_call.1} parent=83 // pred_fallthru
          _
        // Predicated region
        $region89: #{tpu_custom_call.1} parent=83 // pred_check
          %p1622 = pneg %p272
        $region90: #{tpu_custom_call.1} parent=83 // pred_check_branch
          %1624 = sbr.rel (%p1622) target = $region92
        $region91: #{tpu_custom_call.1} parent=83 // pred_region
          %s1625 = sand.u32 %s257, 1
          %s1626 = scalar_lea.sflag [#allocation13], %s1625
          %s1627 = sand.u32 %s257, 1
          %s1628 = smul.addr %s1627, 8
          %s1629 = scalar_lea.vmem [#allocation12], %s1628
          %1630 = dma.done %s1626, 128
        $region92: #{tpu_custom_call.1} parent=83 // pred_fallthru
          _
      $region84: #{tpu_custom_call.1} parent=5 // pred_fallthru
        _
    $region6: #{tpu_custom_call.1} parent=1 // loop_footer
      %s33 = sadd.s32 1, %s29
    $region7: #{tpu_custom_call.1} parent=1 // loop_footer_branch
      %28 = sbr.rel target = $region3
    $region8: #{tpu_custom_call.1} parent=1 // loop_exit
      _
    %1631 = vsyncpa [#allocation3], 1
    %s1632 = scalar_lea.sflag [#allocation3], 1
    %1633 = vsyncpa %s1632, 1
    %1634 = vsyncpa [#allocation6], 1
    %s1635 = scalar_lea.sflag [#allocation6], 1
    %1636 = vsyncpa %s1635, 1
    %1637 = vsyncpa [#allocation9], 1
    %1638 = vsyncpa [#allocation4], 1
    %s1639 = scalar_lea.sflag [#allocation4], 1
    %1640 = vsyncpa %s1639, 1
    %1641 = vsyncpa [#allocation13], 1
    %s1642 = scalar_lea.sflag [#allocation13], 1
    %1643 = vsyncpa %s1642, 1

</llo_original>
